<compile_context>
chip_gen: v7x
topology: tpu7x:2x2x1
jax: 0.10.0
libtpu: 0.0.40
codegen_flags: <defaults>
</compile_context>

<pallas_src>
import functools

import jax
import jax.numpy as jnp
from jax import lax
from jax.experimental import pallas as pl
from jax.experimental.pallas import tpu as pltpu


def _round_up(x, m):
  return (x + m - 1) // m * m


def _pad_to(x, axis, size):
  if x.shape[axis] == size:
    return x
  pad = [(0, 0)] * x.ndim
  pad[axis] = (0, size - x.shape[axis])
  return jnp.pad(x, pad)


def _pad_gate_axis(x, h, hp):
  """Pad the last axis of a [r|z|n]-stacked (..., 3H) tensor per-gate to (..., 3Hp)."""
  if h == hp:
    return x
  parts = jnp.split(x, 3, axis=-1)
  return jnp.concatenate([_pad_to(p, -1, hp) for p in parts], axis=-1)


def gru_recurrence_kernel(z_ref, emb_ref, wl2h_ref, bl2h_ref, wih_ref, bih_ref,
                          whh_ref, bhh_ref, seq_ref, hfinal_ref, gi_scratch):
  """latent2hidden + hoisted input projection + serial GRU recurrence."""
  S, Bp, E = emb_ref.shape
  Hp = whh_ref.shape[0]

  # hidden = latent2hidden(z): initial GRU hidden state (hidden_factor == 1).
  h0 = jnp.dot(z_ref[...], wl2h_ref[...],
               preferred_element_type=jnp.float32) + bl2h_ref[...]          # (Bp, Hp)

  # Hoisted input projection: one big matmul instead of S tiny per-step matmuls.
  x_all = emb_ref[...].reshape(S * Bp, E)
  gi_all = jnp.dot(x_all, wih_ref[...],
                   preferred_element_type=jnp.float32) + bih_ref[...]       # (S*Bp, 3Hp)
  gi_scratch[...] = gi_all.reshape(S, Bp, 3 * Hp)

  whh = whh_ref[...]                                                        # (Hp, 3Hp)
  bhh = bhh_ref[...]                                                        # (1, 3Hp)

  def step(t, h_prev):
    gi = gi_scratch[t]                                                      # (Bp, 3Hp)
    # Only this matmul remains inside the serial dependency chain.
    gh = jnp.dot(h_prev, whh, preferred_element_type=jnp.float32) + bhh     # (Bp, 3Hp)
    # Hp is a multiple of 128 -> gate slices are lane-aligned (no XLU rotates).
    r = jax.nn.sigmoid(gi[:, :Hp] + gh[:, :Hp])
    zg = jax.nn.sigmoid(gi[:, Hp:2 * Hp] + gh[:, Hp:2 * Hp])
    n = jnp.tanh(gi[:, 2 * Hp:] + r * gh[:, 2 * Hp:])
    h_new = (1.0 - zg) * n + zg * h_prev
    seq_ref[t] = h_new
    return h_new                         # hidden state stays in the loop carry (vregs)

  unroll = True if S <= 32 else 4
  h_last = lax.fori_loop(0, S, step, h0, unroll=unroll)
  hfinal_ref[...] = h_last


def vocab_proj_kernel(hs_ref, w_ref, b_ref, out_ref):
  """outputs2vocab: (Bp*ts, Hp) @ (Hp, tv) bf16 matmul with f32 accumulation."""
  Bp, ts, Hp = hs_ref.shape
  tv = out_ref.shape[2]
  hs = hs_ref[...].reshape(Bp * ts, Hp).astype(jnp.bfloat16)
  acc = jnp.dot(hs, w_ref[...], preferred_element_type=jnp.float32)         # (Bp*ts, tv)
  out_ref[...] = (acc + b_ref[...]).reshape(Bp, ts, tv)


def rnn_decoder_forward(z, dec_input_ids, params):
  """Mirrors RNNDecoder.forward(z, dec_input_ids) -> (logits, hidden)."""
  emb_table = params['embedding']                       # (V, E)
  B, S = dec_input_ids.shape
  L = params['w_l2h'].shape[0]
  E = emb_table.shape[1]
  H = params['w_hh'].shape[0]
  V = params['w_out'].shape[1]

  Bp = _round_up(B, 8)          # sublane count
  Hp = _round_up(H, 128)        # lane-aligned gate slices
  Vp = _round_up(V, 128)

  # Time-major embedding gather (transpose the small int ids, not the embedded
  # tensor), then pad the batch to the sublane count.
  emb_tm = emb_table[dec_input_ids.T].astype(jnp.float32)            # (S, B, E)
  emb_tm = _pad_to(emb_tm, 1, Bp)                                    # (S, Bp, E)
  z_p = _pad_to(z.astype(jnp.float32), 0, Bp)                        # (Bp, L)

  # Zero-pad parameters (per-gate padding keeps the [r|z|n] layout; the padded
  # hidden lanes remain exactly zero through the recurrence).
  w_l2h = _pad_to(params['w_l2h'], 1, Hp)                            # (L, Hp)
  b_l2h = _pad_to(params['b_l2h'], 1, Hp)                            # (1, Hp)
  w_ih = _pad_gate_axis(params['w_ih'], H, Hp)                       # (E, 3Hp)
  b_ih = _pad_gate_axis(params['b_ih'], H, Hp)                       # (1, 3Hp)
  w_hh = _pad_to(_pad_gate_axis(params['w_hh'], H, Hp), 0, Hp)       # (Hp, 3Hp)
  b_hh = _pad_gate_axis(params['b_hh'], H, Hp)                       # (1, 3Hp)
  w_out = _pad_to(_pad_to(params['w_out'], 0, Hp), 1, Vp)            # (Hp, Vp)
  w_out_bf16 = w_out.astype(jnp.bfloat16)                            # bf16 MXU weights
  b_out = _pad_to(params['b_out'], 1, Vp)                            # (1, Vp)

  vmem = pl.BlockSpec(memory_space=pltpu.MemorySpace.VMEM)
  gru_cost = pl.CostEstimate(
      flops=(2 * Bp * L * Hp + 2 * S * Bp * E * 3 * Hp
             + 2 * S * Bp * Hp * 3 * Hp + 12 * S * Bp * Hp),
      transcendentals=3 * S * Bp * Hp,
      bytes_accessed=4 * (Bp * L + S * Bp * E + L * Hp + E * 3 * Hp
                          + Hp * 3 * Hp + 7 * Hp + S * Bp * Hp + Bp * Hp),
  )
  hs_sbh, h_final = pl.pallas_call(
      gru_recurrence_kernel,
      out_shape=(
          jax.ShapeDtypeStruct((S, Bp, Hp), jnp.float32),
          jax.ShapeDtypeStruct((Bp, Hp), jnp.float32),
      ),
      in_specs=[vmem] * 8,
      out_specs=(vmem, vmem),
      scratch_shapes=[pltpu.VMEM((S, Bp, 3 * Hp), jnp.float32)],
      compiler_params=pltpu.CompilerParams(vmem_limit_bytes=32 * 1024 * 1024),
      cost_estimate=gru_cost,
  )(z_p, emb_tm, w_l2h, b_l2h, w_ih, b_ih, w_hh, b_hh)

  # Batch-major hidden states for the projection (tiny tensor: H-wide, not V-wide),
  # so logits can be written directly in (B, S, V) layout by the gridded kernel.
  hs_bsh = jnp.transpose(hs_sbh, (1, 0, 2))                          # (Bp, S, Hp)

  # Projection tiles: sequence tile (multiple of 8) x vocab tile (multiple of 128).
  ts = next((c for c in (128, 64, 32, 16, 8) if S % c == 0), S)
  tv = next(c for c in (512, 256, 128) if Vp % c == 0)
  grid = (S // ts, Vp // tv)

  proj_cost = pl.CostEstimate(
      flops=2 * S * Bp * Hp * Vp + S * Bp * Vp,
      transcendentals=0,
      bytes_accessed=4 * S * Bp * Hp + 2 * Hp * Vp + 4 * Vp + 4 * Bp * S * Vp,
  )
  logits_p = pl.pallas_call(
      vocab_proj_kernel,
      out_shape=jax.ShapeDtypeStruct((Bp, S, Vp), jnp.float32),
      grid_spec=pltpu.PrefetchScalarGridSpec(
          num_scalar_prefetch=0,
          grid=grid,
          in_specs=[
              pl.BlockSpec((Bp, ts, Hp), lambda si, vi: (0, si, 0)),
              pl.BlockSpec((Hp, tv), lambda si, vi: (0, vi)),
              pl.BlockSpec((1, tv), lambda si, vi: (0, vi)),
          ],
          out_specs=pl.BlockSpec((Bp, ts, tv), lambda si, vi: (0, si, vi)),
      ),
      compiler_params=pltpu.CompilerParams(
          dimension_semantics=("parallel", "parallel"),
          vmem_limit_bytes=32 * 1024 * 1024,
      ),
      cost_estimate=proj_cost,
  )(hs_bsh, w_out_bf16, b_out)

  logits = logits_p[:B, :, :V]                                       # (B, S, V)
  hidden = h_final[:B, :H][None]                                     # (1, B, H)
  return logits, hidden


def reference_forward(z, dec_input_ids, params):
  """Pure-JAX reference of the same forward pass (for correctness check)."""
  emb = params['embedding'][dec_input_ids].astype(jnp.float32)       # (B, S, E)
  H = params['w_hh'].shape[0]
  h = z @ params['w_l2h'] + params['b_l2h']                          # (B, H)

  def step(h_prev, x_t):
    gi = x_t @ params['w_ih'] + params['b_ih']
    gh = h_prev @ params['w_hh'] + params['b_hh']
    r = jax.nn.sigmoid(gi[:, :H] + gh[:, :H])
    zg = jax.nn.sigmoid(gi[:, H:2 * H] + gh[:, H:2 * H])
    n = jnp.tanh(gi[:, 2 * H:] + r * gh[:, 2 * H:])
    h_new = (1.0 - zg) * n + zg * h_prev
    return h_new, h_new

  h_final, outs = lax.scan(step, h, jnp.transpose(emb, (1, 0, 2)))   # outs: (S, B, H)
  outs = jnp.transpose(outs, (1, 0, 2))                              # (B, S, H)
  logits = outs @ params['w_out'] + params['b_out'][0]
  return logits, h_final[None]


def init_params(key, vocab_size, embedding_size, hidden_size, latent_size):
  """Deterministic synthetic init matching the module's parameter shapes.

  PyTorch shapes:
    embedding.weight            (V, E)
    latent2hidden.weight/bias   (H*factor, L) / (H*factor,)
    rnn.weight_ih_l0/bias_ih_l0 (3H, E) / (3H,)
    rnn.weight_hh_l0/bias_hh_l0 (3H, H) / (3H,)
    outputs2vocab.weight/bias   (V, H) / (V,)
  Stored pre-transposed for row-vector matmuls; gate order is [r, z, n].
  """
  V, E, H, L = vocab_size, embedding_size, hidden_size, latent_size
  ks = jax.random.split(key, 6)
  scale = 1.0 / jnp.sqrt(H)
  return {
      'embedding': jax.random.uniform(ks[0], (V, E), jnp.float32, -0.001, 0.001),
      'w_l2h': jax.random.normal(ks[1], (L, H), jnp.float32) * 0.1,
      'b_l2h': jnp.full((1, H), 0.01, jnp.float32),
      'w_ih': jax.random.uniform(ks[2], (E, 3 * H), jnp.float32, -scale, scale),
      'b_ih': jax.random.uniform(ks[3], (1, 3 * H), jnp.float32, -scale, scale),
      'w_hh': jax.random.uniform(ks[4], (H, 3 * H), jnp.float32, -scale, scale),
      'b_hh': jnp.zeros((1, 3 * H), jnp.float32),
      'w_out': jax.random.normal(ks[5], (H, V), jnp.float32) * 0.1,
      'b_out': jnp.full((1, V), 0.01, jnp.float32),
  }


if __name__ == "__main__":
  # Small, module-consistent shapes.
  vocab_size, embedding_size, hidden_size, latent_size = 128, 32, 64, 16
  batch, seq_len = 2, 8

  key = jax.random.PRNGKey(0)
  k_params, k_z, k_ids = jax.random.split(key, 3)

  params = init_params(k_params, vocab_size, embedding_size, hidden_size, latent_size)
  z = jax.random.normal(k_z, (batch, latent_size), jnp.float32)
  dec_input_ids = jax.random.randint(k_ids, (batch, seq_len), 0, vocab_size, jnp.int32)

  fwd = jax.jit(functools.partial(rnn_decoder_forward, params=params))
  logits, hidden = fwd(z, dec_input_ids)
  jax.block_until_ready((logits, hidden))

  # Correctness check against a pure-JAX f32 reference.
  ref_logits, ref_hidden = reference_forward(z, dec_input_ids, params)
  assert logits.shape == (batch, seq_len, vocab_size)
  assert hidden.shape == (1, batch, hidden_size)
  # Vocab projection uses bf16 MXU inputs with f32 accumulation -> relaxed logits tol.
  assert jnp.allclose(logits, ref_logits, rtol=2e-2, atol=2e-2)
  assert jnp.allclose(hidden, ref_hidden, rtol=1e-4, atol=1e-4)

  print("KERNEL_OK")
</pallas_src>

<mosaic_0001>
module attributes {stable_mosaic.version = 11 : i64} {
  func.func @vocab_proj_kernel(%arg0: i32, %arg1: i32, %arg2: memref<8x8x128xf32, #tpu.memory_space<vmem>>, %arg3: memref<128x128xbf16, #tpu.memory_space<vmem>>, %arg4: memref<1x128xf32, #tpu.memory_space<vmem>>, %arg5: memref<8x8x128xf32, #tpu.memory_space<vmem>>) attributes {dimension_semantics = [#tpu.dimension_semantics<parallel>, #tpu.dimension_semantics<parallel>], iteration_bounds = array<i64: 1, 1>, scalar_prefetch = 0 : i64, scratch_operands = 0 : i64, tpu.core_type = #tpu.core_type<tc>, window_params = [{transform_indices = @transform_0, window_bounds = array<i64: 8, 8, 128>}, {transform_indices = @transform_1, window_bounds = array<i64: 128, 128>}, {transform_indices = @transform_2, window_bounds = array<i64: 1, 128>}, {transform_indices = @transform_3, window_bounds = array<i64: 8, 8, 128>}]} {
    %c0 = arith.constant 0 : index
    %c0_0 = arith.constant 0 : index
    %c0_1 = arith.constant 0 : index
    %0 = vector.load %arg2[%c0, %c0_0, %c0_1] : memref<8x8x128xf32, #tpu.memory_space<vmem>>, vector<8x8x128xf32>
    %1 = vector.shape_cast %0 : vector<8x8x128xf32> to vector<64x128xf32>
    %2 = arith.truncf %1 : vector<64x128xf32> to vector<64x128xbf16>
    %c0_2 = arith.constant 0 : index
    %c0_3 = arith.constant 0 : index
    %3 = vector.load %arg3[%c0_2, %c0_3] : memref<128x128xbf16, #tpu.memory_space<vmem>>, vector<128x128xbf16>
    %cst = arith.constant dense<0.000000e+00> : vector<64x128xf32>
    %4 = tpu.matmul %2, %3, %cst {dimension_numbers = #tpu.dot_dimension_numbers<[1], [0], [0], [1], [0, 0, 1, 1], [], []>} : vector<64x128xbf16>, vector<128x128xbf16>, vector<64x128xf32> -> vector<64x128xf32>
    %c0_4 = arith.constant 0 : index
    %c0_5 = arith.constant 0 : index
    %5 = vector.load %arg4[%c0_4, %c0_5] : memref<1x128xf32, #tpu.memory_space<vmem>>, vector<1x128xf32>
    %6 = vector.broadcast %5 : vector<1x128xf32> to vector<64x128xf32>
    %7 = arith.addf %4, %6 : vector<64x128xf32>
    %8 = vector.shape_cast %7 : vector<64x128xf32> to vector<8x8x128xf32>
    %c0_6 = arith.constant 0 : index
    %c0_7 = arith.constant 0 : index
    %c0_8 = arith.constant 0 : index
    %9 = vector.load %arg5[%c0_6, %c0_7, %c0_8] : memref<8x8x128xf32, #tpu.memory_space<vmem>>, vector<8x8x128xf32>
    tpu.vector_store %arg5[%c0_6, %c0_7, %c0_8], %8 {strides = array<i32>} : memref<8x8x128xf32, #tpu.memory_space<vmem>>, vector<8x8x128xf32>,
    return
  }
  func.func @transform_0(%arg0: i32, %arg1: i32) -> (i32, i32, i32) {
    %c0_i32 = arith.constant 0 : i32
    %c0_i32_0 = arith.constant 0 : i32
    %c0_i32_1 = arith.constant 0 : i32
    return %c0_i32, %arg0, %c0_i32_0 : i32, i32, i32
  }
  func.func @transform_1(%arg0: i32, %arg1: i32) -> (i32, i32) {
    %c0_i32 = arith.constant 0 : i32
    %c0_i32_0 = arith.constant 0 : i32
    return %c0_i32, %arg1 : i32, i32
  }
  func.func @transform_2(%arg0: i32, %arg1: i32) -> (i32, i32) {
    %c0_i32 = arith.constant 0 : i32
    %c0_i32_0 = arith.constant 0 : i32
    return %c0_i32, %arg1 : i32, i32
  }
  func.func @transform_3(%arg0: i32, %arg1: i32) -> (i32, i32, i32) {
    %c0_i32 = arith.constant 0 : i32
    %c0_i32_0 = arith.constant 0 : i32
    return %c0_i32, %arg0, %arg1 : i32, i32, i32
  }
}

module attributes {stable_mosaic.version = 11 : i64} {
  func.func @gru_recurrence_kernel(%arg0: memref<8x16xf32, #tpu.memory_space<vmem>>, %arg1: memref<8x8x32xf32, #tpu.memory_space<vmem>>, %arg2: memref<16x128xf32, #tpu.memory_space<vmem>>, %arg3: memref<1x128xf32, #tpu.memory_space<vmem>>, %arg4: memref<32x384xf32, #tpu.memory_space<vmem>>, %arg5: memref<1x384xf32, #tpu.memory_space<vmem>>, %arg6: memref<128x384xf32, #tpu.memory_space<vmem>>, %arg7: memref<1x384xf32, #tpu.memory_space<vmem>>, %arg8: memref<8x8x128xf32, #tpu.memory_space<vmem>>, %arg9: memref<8x128xf32, #tpu.memory_space<vmem>>, %arg10: memref<8x8x384xf32, #tpu.memory_space<vmem>>) attributes {dimension_semantics = [], scalar_prefetch = 0 : i64, scratch_operands = 1 : i64, tpu.core_type = #tpu.core_type<tc>} {
    %c0 = arith.constant 0 : index
    %c0_0 = arith.constant 0 : index
    %0 = vector.load %arg0[%c0, %c0_0] : memref<8x16xf32, #tpu.memory_space<vmem>>, vector<8x16xf32>
    %c0_1 = arith.constant 0 : index
    %c0_2 = arith.constant 0 : index
    %1 = vector.load %arg2[%c0_1, %c0_2] : memref<16x128xf32, #tpu.memory_space<vmem>>, vector<16x128xf32>
    %cst = arith.constant dense<0.000000e+00> : vector<8x128xf32>
    %2 = tpu.matmul %0, %1, %cst {dimension_numbers = #tpu.dot_dimension_numbers<[1], [0], [0], [1], [0, 0, 1, 1], [], []>} : vector<8x16xf32>, vector<16x128xf32>, vector<8x128xf32> -> vector<8x128xf32>
    %c0_3 = arith.constant 0 : index
    %c0_4 = arith.constant 0 : index
    %3 = vector.load %arg3[%c0_3, %c0_4] : memref<1x128xf32, #tpu.memory_space<vmem>>, vector<1x128xf32>
    %4 = vector.broadcast %3 : vector<1x128xf32> to vector<8x128xf32>
    %5 = arith.addf %2, %4 : vector<8x128xf32>
    %c0_5 = arith.constant 0 : index
    %c0_6 = arith.constant 0 : index
    %c0_7 = arith.constant 0 : index
    %6 = vector.load %arg1[%c0_5, %c0_6, %c0_7] : memref<8x8x32xf32, #tpu.memory_space<vmem>>, vector<8x8x32xf32>
    %7 = vector.shape_cast %6 : vector<8x8x32xf32> to vector<64x32xf32>
    %c0_8 = arith.constant 0 : index
    %c0_9 = arith.constant 0 : index
    %8 = vector.load %arg4[%c0_8, %c0_9] : memref<32x384xf32, #tpu.memory_space<vmem>>, vector<32x384xf32>
    %cst_10 = arith.constant dense<0.000000e+00> : vector<64x384xf32>
    %9 = tpu.matmul %7, %8, %cst_10 {dimension_numbers = #tpu.dot_dimension_numbers<[1], [0], [0], [1], [0, 0, 1, 1], [], []>} : vector<64x32xf32>, vector<32x384xf32>, vector<64x384xf32> -> vector<64x384xf32>
    %c0_11 = arith.constant 0 : index
    %c0_12 = arith.constant 0 : index
    %10 = vector.load %arg5[%c0_11, %c0_12] : memref<1x384xf32, #tpu.memory_space<vmem>>, vector<1x384xf32>
    %11 = vector.broadcast %10 : vector<1x384xf32> to vector<64x384xf32>
    %12 = arith.addf %9, %11 : vector<64x384xf32>
    %13 = vector.shape_cast %12 : vector<64x384xf32> to vector<8x8x384xf32>
    %c0_13 = arith.constant 0 : index
    %c0_14 = arith.constant 0 : index
    %c0_15 = arith.constant 0 : index
    %14 = vector.load %arg10[%c0_13, %c0_14, %c0_15] : memref<8x8x384xf32, #tpu.memory_space<vmem>>, vector<8x8x384xf32>
    tpu.vector_store %arg10[%c0_13, %c0_14, %c0_15], %13 {strides = array<i32>} : memref<8x8x384xf32, #tpu.memory_space<vmem>>, vector<8x8x384xf32>,
    %c0_16 = arith.constant 0 : index
    %c0_17 = arith.constant 0 : index
    %15 = vector.load %arg6[%c0_16, %c0_17] : memref<128x384xf32, #tpu.memory_space<vmem>>, vector<128x384xf32>
    %c0_18 = arith.constant 0 : index
    %c0_19 = arith.constant 0 : index
    %16 = vector.load %arg7[%c0_18, %c0_19] : memref<1x384xf32, #tpu.memory_space<vmem>>, vector<1x384xf32>
    %c0_i32 = arith.constant 0 : i32
    %17 = arith.index_cast %c0_i32 : i32 to index
    %c0_20 = arith.constant 0 : index
    %c0_21 = arith.constant 0 : index
    %18 = vector.load %arg10[%17, %c0_20, %c0_21] : memref<8x8x384xf32, #tpu.memory_space<vmem>>, vector<1x8x384xf32>
    %19 = vector.shape_cast %18 : vector<1x8x384xf32> to vector<8x384xf32>
    %cst_22 = arith.constant dense<0.000000e+00> : vector<8x384xf32>
    %20 = tpu.matmul %5, %15, %cst_22 {dimension_numbers = #tpu.dot_dimension_numbers<[1], [0], [0], [1], [0, 0, 1, 1], [], []>} : vector<8x128xf32>, vector<128x384xf32>, vector<8x384xf32> -> vector<8x384xf32>
    %21 = vector.broadcast %16 : vector<1x384xf32> to vector<8x384xf32>
    %22 = arith.addf %20, %21 : vector<8x384xf32>
    %23 = vector.extract_strided_slice %19 {offsets = [0, 0], sizes = [8, 128], strides = [1, 1]} : vector<8x384xf32> to vector<8x128xf32>
    %24 = vector.extract_strided_slice %22 {offsets = [0, 0], sizes = [8, 128], strides = [1, 1]} : vector<8x384xf32> to vector<8x128xf32>
    %25 = arith.addf %23, %24 : vector<8x128xf32>
    %26 = arith.negf %25 : vector<8x128xf32>
    %27 = math.exp %26 : vector<8x128xf32>
    %cst_23 = arith.constant 1.000000e+00 : f32
    %28 = vector.broadcast %cst_23 : f32 to vector<8x128xf32>
    %29 = arith.addf %28, %27 : vector<8x128xf32>
    %30 = arith.divf %28, %29 : vector<8x128xf32>
    %31 = vector.extract_strided_slice %19 {offsets = [0, 128], sizes = [8, 128], strides = [1, 1]} : vector<8x384xf32> to vector<8x128xf32>
    %32 = vector.extract_strided_slice %22 {offsets = [0, 128], sizes = [8, 128], strides = [1, 1]} : vector<8x384xf32> to vector<8x128xf32>
    %33 = arith.addf %31, %32 : vector<8x128xf32>
    %34 = arith.negf %33 : vector<8x128xf32>
    %35 = math.exp %34 : vector<8x128xf32>
    %cst_24 = arith.constant 1.000000e+00 : f32
    %36 = vector.broadcast %cst_24 : f32 to vector<8x128xf32>
    %37 = arith.addf %36, %35 : vector<8x128xf32>
    %38 = arith.divf %36, %37 : vector<8x128xf32>
    %39 = vector.extract_strided_slice %19 {offsets = [0, 256], sizes = [8, 128], strides = [1, 1]} : vector<8x384xf32> to vector<8x128xf32>
    %40 = vector.extract_strided_slice %22 {offsets = [0, 256], sizes = [8, 128], strides = [1, 1]} : vector<8x384xf32> to vector<8x128xf32>
    %41 = arith.mulf %30, %40 : vector<8x128xf32>
    %42 = arith.addf %39, %41 : vector<8x128xf32>
    %43 = math.tanh %42 : vector<8x128xf32>
    %cst_25 = arith.constant 1.000000e+00 : f32
    %44 = vector.broadcast %cst_25 : f32 to vector<8x128xf32>
    %45 = arith.subf %44, %38 : vector<8x128xf32>
    %46 = arith.mulf %45, %43 : vector<8x128xf32>
    %47 = arith.mulf %38, %5 : vector<8x128xf32>
    %48 = arith.addf %46, %47 : vector<8x128xf32>
    %49 = arith.index_cast %c0_i32 : i32 to index
    %c0_26 = arith.constant 0 : index
    %c0_27 = arith.constant 0 : index
    %50 = vector.load %arg8[%49, %c0_26, %c0_27] : memref<8x8x128xf32, #tpu.memory_space<vmem>>, vector<1x8x128xf32>
    %51 = vector.shape_cast %50 : vector<1x8x128xf32> to vector<8x128xf32>
    %52 = vector.shape_cast %48 : vector<8x128xf32> to vector<1x8x128xf32>
    tpu.vector_store %arg8[%49, %c0_26, %c0_27], %52 {strides = array<i32>} : memref<8x8x128xf32, #tpu.memory_space<vmem>>, vector<1x8x128xf32>,
    %c1_i32 = arith.constant 1 : i32
    %53 = arith.index_cast %c1_i32 : i32 to index
    %c0_28 = arith.constant 0 : index
    %c0_29 = arith.constant 0 : index
    %54 = vector.load %arg10[%53, %c0_28, %c0_29] : memref<8x8x384xf32, #tpu.memory_space<vmem>>, vector<1x8x384xf32>
    %55 = vector.shape_cast %54 : vector<1x8x384xf32> to vector<8x384xf32>
    %cst_30 = arith.constant dense<0.000000e+00> : vector<8x384xf32>
    %56 = tpu.matmul %48, %15, %cst_30 {dimension_numbers = #tpu.dot_dimension_numbers<[1], [0], [0], [1], [0, 0, 1, 1], [], []>} : vector<8x128xf32>, vector<128x384xf32>, vector<8x384xf32> -> vector<8x384xf32>
    %57 = vector.broadcast %16 : vector<1x384xf32> to vector<8x384xf32>
    %58 = arith.addf %56, %57 : vector<8x384xf32>
    %59 = vector.extract_strided_slice %55 {offsets = [0, 0], sizes = [8, 128], strides = [1, 1]} : vector<8x384xf32> to vector<8x128xf32>
    %60 = vector.extract_strided_slice %58 {offsets = [0, 0], sizes = [8, 128], strides = [1, 1]} : vector<8x384xf32> to vector<8x128xf32>
    %61 = arith.addf %59, %60 : vector<8x128xf32>
    %62 = arith.negf %61 : vector<8x128xf32>
    %63 = math.exp %62 : vector<8x128xf32>
    %cst_31 = arith.constant 1.000000e+00 : f32
    %64 = vector.broadcast %cst_31 : f32 to vector<8x128xf32>
    %65 = arith.addf %64, %63 : vector<8x128xf32>
    %66 = arith.divf %64, %65 : vector<8x128xf32>
    %67 = vector.extract_strided_slice %55 {offsets = [0, 128], sizes = [8, 128], strides = [1, 1]} : vector<8x384xf32> to vector<8x128xf32>
    %68 = vector.extract_strided_slice %58 {offsets = [0, 128], sizes = [8, 128], strides = [1, 1]} : vector<8x384xf32> to vector<8x128xf32>
    %69 = arith.addf %67, %68 : vector<8x128xf32>
    %70 = arith.negf %69 : vector<8x128xf32>
    %71 = math.exp %70 : vector<8x128xf32>
    %cst_32 = arith.constant 1.000000e+00 : f32
    %72 = vector.broadcast %cst_32 : f32 to vector<8x128xf32>
    %73 = arith.addf %72, %71 : vector<8x128xf32>
    %74 = arith.divf %72, %73 : vector<8x128xf32>
    %75 = vector.extract_strided_slice %55 {offsets = [0, 256], sizes = [8, 128], strides = [1, 1]} : vector<8x384xf32> to vector<8x128xf32>
    %76 = vector.extract_strided_slice %58 {offsets = [0, 256], sizes = [8, 128], strides = [1, 1]} : vector<8x384xf32> to vector<8x128xf32>
    %77 = arith.mulf %66, %76 : vector<8x128xf32>
    %78 = arith.addf %75, %77 : vector<8x128xf32>
    %79 = math.tanh %78 : vector<8x128xf32>
    %cst_33 = arith.constant 1.000000e+00 : f32
    %80 = vector.broadcast %cst_33 : f32 to vector<8x128xf32>
    %81 = arith.subf %80, %74 : vector<8x128xf32>
    %82 = arith.mulf %81, %79 : vector<8x128xf32>
    %83 = arith.mulf %74, %48 : vector<8x128xf32>
    %84 = arith.addf %82, %83 : vector<8x128xf32>
    %85 = arith.index_cast %c1_i32 : i32 to index
    %c0_34 = arith.constant 0 : index
    %c0_35 = arith.constant 0 : index
    %86 = vector.load %arg8[%85, %c0_34, %c0_35] : memref<8x8x128xf32, #tpu.memory_space<vmem>>, vector<1x8x128xf32>
    %87 = vector.shape_cast %86 : vector<1x8x128xf32> to vector<8x128xf32>
    %88 = vector.shape_cast %84 : vector<8x128xf32> to vector<1x8x128xf32>
    tpu.vector_store %arg8[%85, %c0_34, %c0_35], %88 {strides = array<i32>} : memref<8x8x128xf32, #tpu.memory_space<vmem>>, vector<1x8x128xf32>,
    %c2_i32 = arith.constant 2 : i32
    %89 = arith.index_cast %c2_i32 : i32 to index
    %c0_36 = arith.constant 0 : index
    %c0_37 = arith.constant 0 : index
    %90 = vector.load %arg10[%89, %c0_36, %c0_37] : memref<8x8x384xf32, #tpu.memory_space<vmem>>, vector<1x8x384xf32>
    %91 = vector.shape_cast %90 : vector<1x8x384xf32> to vector<8x384xf32>
    %cst_38 = arith.constant dense<0.000000e+00> : vector<8x384xf32>
    %92 = tpu.matmul %84, %15, %cst_38 {dimension_numbers = #tpu.dot_dimension_numbers<[1], [0], [0], [1], [0, 0, 1, 1], [], []>} : vector<8x128xf32>, vector<128x384xf32>, vector<8x384xf32> -> vector<8x384xf32>
    %93 = vector.broadcast %16 : vector<1x384xf32> to vector<8x384xf32>
    %94 = arith.addf %92, %93 : vector<8x384xf32>
    %95 = vector.extract_strided_slice %91 {offsets = [0, 0], sizes = [8, 128], strides = [1, 1]} : vector<8x384xf32> to vector<8x128xf32>
    %96 = vector.extract_strided_slice %94 {offsets = [0, 0], sizes = [8, 128], strides = [1, 1]} : vector<8x384xf32> to vector<8x128xf32>
    %97 = arith.addf %95, %96 : vector<8x128xf32>
    %98 = arith.negf %97 : vector<8x128xf32>
    %99 = math.exp %98 : vector<8x128xf32>
    %cst_39 = arith.constant 1.000000e+00 : f32
    %100 = vector.broadcast %cst_39 : f32 to vector<8x128xf32>
    %101 = arith.addf %100, %99 : vector<8x128xf32>
    %102 = arith.divf %100, %101 : vector<8x128xf32>
    %103 = vector.extract_strided_slice %91 {offsets = [0, 128], sizes = [8, 128], strides = [1, 1]} : vector<8x384xf32> to vector<8x128xf32>
    %104 = vector.extract_strided_slice %94 {offsets = [0, 128], sizes = [8, 128], strides = [1, 1]} : vector<8x384xf32> to vector<8x128xf32>
    %105 = arith.addf %103, %104 : vector<8x128xf32>
    %106 = arith.negf %105 : vector<8x128xf32>
    %107 = math.exp %106 : vector<8x128xf32>
    %cst_40 = arith.constant 1.000000e+00 : f32
    %108 = vector.broadcast %cst_40 : f32 to vector<8x128xf32>
    %109 = arith.addf %108, %107 : vector<8x128xf32>
    %110 = arith.divf %108, %109 : vector<8x128xf32>
    %111 = vector.extract_strided_slice %91 {offsets = [0, 256], sizes = [8, 128], strides = [1, 1]} : vector<8x384xf32> to vector<8x128xf32>
    %112 = vector.extract_strided_slice %94 {offsets = [0, 256], sizes = [8, 128], strides = [1, 1]} : vector<8x384xf32> to vector<8x128xf32>
    %113 = arith.mulf %102, %112 : vector<8x128xf32>
    %114 = arith.addf %111, %113 : vector<8x128xf32>
    %115 = math.tanh %114 : vector<8x128xf32>
    %cst_41 = arith.constant 1.000000e+00 : f32
    %116 = vector.broadcast %cst_41 : f32 to vector<8x128xf32>
    %117 = arith.subf %116, %110 : vector<8x128xf32>
    %118 = arith.mulf %117, %115 : vector<8x128xf32>
    %119 = arith.mulf %110, %84 : vector<8x128xf32>
    %120 = arith.addf %118, %119 : vector<8x128xf32>
    %121 = arith.index_cast %c2_i32 : i32 to index
    %c0_42 = arith.constant 0 : index
    %c0_43 = arith.constant 0 : index
    %122 = vector.load %arg8[%121, %c0_42, %c0_43] : memref<8x8x128xf32, #tpu.memory_space<vmem>>, vector<1x8x128xf32>
    %123 = vector.shape_cast %122 : vector<1x8x128xf32> to vector<8x128xf32>
    %124 = vector.shape_cast %120 : vector<8x128xf32> to vector<1x8x128xf32>
    tpu.vector_store %arg8[%121, %c0_42, %c0_43], %124 {strides = array<i32>} : memref<8x8x128xf32, #tpu.memory_space<vmem>>, vector<1x8x128xf32>,
    %c3_i32 = arith.constant 3 : i32
    %125 = arith.index_cast %c3_i32 : i32 to index
    %c0_44 = arith.constant 0 : index
    %c0_45 = arith.constant 0 : index
    %126 = vector.load %arg10[%125, %c0_44, %c0_45] : memref<8x8x384xf32, #tpu.memory_space<vmem>>, vector<1x8x384xf32>
    %127 = vector.shape_cast %126 : vector<1x8x384xf32> to vector<8x384xf32>
    %cst_46 = arith.constant dense<0.000000e+00> : vector<8x384xf32>
    %128 = tpu.matmul %120, %15, %cst_46 {dimension_numbers = #tpu.dot_dimension_numbers<[1], [0], [0], [1], [0, 0, 1, 1], [], []>} : vector<8x128xf32>, vector<128x384xf32>, vector<8x384xf32> -> vector<8x384xf32>
    %129 = vector.broadcast %16 : vector<1x384xf32> to vector<8x384xf32>
    %130 = arith.addf %128, %129 : vector<8x384xf32>
    %131 = vector.extract_strided_slice %127 {offsets = [0, 0], sizes = [8, 128], strides = [1, 1]} : vector<8x384xf32> to vector<8x128xf32>
    %132 = vector.extract_strided_slice %130 {offsets = [0, 0], sizes = [8, 128], strides = [1, 1]} : vector<8x384xf32> to vector<8x128xf32>
    %133 = arith.addf %131, %132 : vector<8x128xf32>
    %134 = arith.negf %133 : vector<8x128xf32>
    %135 = math.exp %134 : vector<8x128xf32>
    %cst_47 = arith.constant 1.000000e+00 : f32
    %136 = vector.broadcast %cst_47 : f32 to vector<8x128xf32>
    %137 = arith.addf %136, %135 : vector<8x128xf32>
    %138 = arith.divf %136, %137 : vector<8x128xf32>
    %139 = vector.extract_strided_slice %127 {offsets = [0, 128], sizes = [8, 128], strides = [1, 1]} : vector<8x384xf32> to vector<8x128xf32>
    %140 = vector.extract_strided_slice %130 {offsets = [0, 128], sizes = [8, 128], strides = [1, 1]} : vector<8x384xf32> to vector<8x128xf32>
    %141 = arith.addf %139, %140 : vector<8x128xf32>
    %142 = arith.negf %141 : vector<8x128xf32>
    %143 = math.exp %142 : vector<8x128xf32>
    %cst_48 = arith.constant 1.000000e+00 : f32
    %144 = vector.broadcast %cst_48 : f32 to vector<8x128xf32>
    %145 = arith.addf %144, %143 : vector<8x128xf32>
    %146 = arith.divf %144, %145 : vector<8x128xf32>
    %147 = vector.extract_strided_slice %127 {offsets = [0, 256], sizes = [8, 128], strides = [1, 1]} : vector<8x384xf32> to vector<8x128xf32>
    %148 = vector.extract_strided_slice %130 {offsets = [0, 256], sizes = [8, 128], strides = [1, 1]} : vector<8x384xf32> to vector<8x128xf32>
    %149 = arith.mulf %138, %148 : vector<8x128xf32>
    %150 = arith.addf %147, %149 : vector<8x128xf32>
    %151 = math.tanh %150 : vector<8x128xf32>
    %cst_49 = arith.constant 1.000000e+00 : f32
    %152 = vector.broadcast %cst_49 : f32 to vector<8x128xf32>
    %153 = arith.subf %152, %146 : vector<8x128xf32>
    %154 = arith.mulf %153, %151 : vector<8x128xf32>
    %155 = arith.mulf %146, %120 : vector<8x128xf32>
    %156 = arith.addf %154, %155 : vector<8x128xf32>
    %157 = arith.index_cast %c3_i32 : i32 to index
    %c0_50 = arith.constant 0 : index
    %c0_51 = arith.constant 0 : index
    %158 = vector.load %arg8[%157, %c0_50, %c0_51] : memref<8x8x128xf32, #tpu.memory_space<vmem>>, vector<1x8x128xf32>
    %159 = vector.shape_cast %158 : vector<1x8x128xf32> to vector<8x128xf32>
    %160 = vector.shape_cast %156 : vector<8x128xf32> to vector<1x8x128xf32>
    tpu.vector_store %arg8[%157, %c0_50, %c0_51], %160 {strides = array<i32>} : memref<8x8x128xf32, #tpu.memory_space<vmem>>, vector<1x8x128xf32>,
    %c4_i32 = arith.constant 4 : i32
    %161 = arith.index_cast %c4_i32 : i32 to index
    %c0_52 = arith.constant 0 : index
    %c0_53 = arith.constant 0 : index
    %162 = vector.load %arg10[%161, %c0_52, %c0_53] : memref<8x8x384xf32, #tpu.memory_space<vmem>>, vector<1x8x384xf32>
    %163 = vector.shape_cast %162 : vector<1x8x384xf32> to vector<8x384xf32>
    %cst_54 = arith.constant dense<0.000000e+00> : vector<8x384xf32>
    %164 = tpu.matmul %156, %15, %cst_54 {dimension_numbers = #tpu.dot_dimension_numbers<[1], [0], [0], [1], [0, 0, 1, 1], [], []>} : vector<8x128xf32>, vector<128x384xf32>, vector<8x384xf32> -> vector<8x384xf32>
    %165 = vector.broadcast %16 : vector<1x384xf32> to vector<8x384xf32>
    %166 = arith.addf %164, %165 : vector<8x384xf32>
    %167 = vector.extract_strided_slice %163 {offsets = [0, 0], sizes = [8, 128], strides = [1, 1]} : vector<8x384xf32> to vector<8x128xf32>
    %168 = vector.extract_strided_slice %166 {offsets = [0, 0], sizes = [8, 128], strides = [1, 1]} : vector<8x384xf32> to vector<8x128xf32>
    %169 = arith.addf %167, %168 : vector<8x128xf32>
    %170 = arith.negf %169 : vector<8x128xf32>
    %171 = math.exp %170 : vector<8x128xf32>
    %cst_55 = arith.constant 1.000000e+00 : f32
    %172 = vector.broadcast %cst_55 : f32 to vector<8x128xf32>
    %173 = arith.addf %172, %171 : vector<8x128xf32>
    %174 = arith.divf %172, %173 : vector<8x128xf32>
    %175 = vector.extract_strided_slice %163 {offsets = [0, 128], sizes = [8, 128], strides = [1, 1]} : vector<8x384xf32> to vector<8x128xf32>
    %176 = vector.extract_strided_slice %166 {offsets = [0, 128], sizes = [8, 128], strides = [1, 1]} : vector<8x384xf32> to vector<8x128xf32>
    %177 = arith.addf %175, %176 : vector<8x128xf32>
    %178 = arith.negf %177 : vector<8x128xf32>
    %179 = math.exp %178 : vector<8x128xf32>
    %cst_56 = arith.constant 1.000000e+00 : f32
    %180 = vector.broadcast %cst_56 : f32 to vector<8x128xf32>
    %181 = arith.addf %180, %179 : vector<8x128xf32>
    %182 = arith.divf %180, %181 : vector<8x128xf32>
    %183 = vector.extract_strided_slice %163 {offsets = [0, 256], sizes = [8, 128], strides = [1, 1]} : vector<8x384xf32> to vector<8x128xf32>
    %184 = vector.extract_strided_slice %166 {offsets = [0, 256], sizes = [8, 128], strides = [1, 1]} : vector<8x384xf32> to vector<8x128xf32>
    %185 = arith.mulf %174, %184 : vector<8x128xf32>
    %186 = arith.addf %183, %185 : vector<8x128xf32>
    %187 = math.tanh %186 : vector<8x128xf32>
    %cst_57 = arith.constant 1.000000e+00 : f32
    %188 = vector.broadcast %cst_57 : f32 to vector<8x128xf32>
    %189 = arith.subf %188, %182 : vector<8x128xf32>
    %190 = arith.mulf %189, %187 : vector<8x128xf32>
    %191 = arith.mulf %182, %156 : vector<8x128xf32>
    %192 = arith.addf %190, %191 : vector<8x128xf32>
    %193 = arith.index_cast %c4_i32 : i32 to index
    %c0_58 = arith.constant 0 : index
    %c0_59 = arith.constant 0 : index
    %194 = vector.load %arg8[%193, %c0_58, %c0_59] : memref<8x8x128xf32, #tpu.memory_space<vmem>>, vector<1x8x128xf32>
    %195 = vector.shape_cast %194 : vector<1x8x128xf32> to vector<8x128xf32>
    %196 = vector.shape_cast %192 : vector<8x128xf32> to vector<1x8x128xf32>
    tpu.vector_store %arg8[%193, %c0_58, %c0_59], %196 {strides = array<i32>} : memref<8x8x128xf32, #tpu.memory_space<vmem>>, vector<1x8x128xf32>,
    %c5_i32 = arith.constant 5 : i32
    %197 = arith.index_cast %c5_i32 : i32 to index
    %c0_60 = arith.constant 0 : index
    %c0_61 = arith.constant 0 : index
    %198 = vector.load %arg10[%197, %c0_60, %c0_61] : memref<8x8x384xf32, #tpu.memory_space<vmem>>, vector<1x8x384xf32>
    %199 = vector.shape_cast %198 : vector<1x8x384xf32> to vector<8x384xf32>
    %cst_62 = arith.constant dense<0.000000e+00> : vector<8x384xf32>
    %200 = tpu.matmul %192, %15, %cst_62 {dimension_numbers = #tpu.dot_dimension_numbers<[1], [0], [0], [1], [0, 0, 1, 1], [], []>} : vector<8x128xf32>, vector<128x384xf32>, vector<8x384xf32> -> vector<8x384xf32>
    %201 = vector.broadcast %16 : vector<1x384xf32> to vector<8x384xf32>
    %202 = arith.addf %200, %201 : vector<8x384xf32>
    %203 = vector.extract_strided_slice %199 {offsets = [0, 0], sizes = [8, 128], strides = [1, 1]} : vector<8x384xf32> to vector<8x128xf32>
    %204 = vector.extract_strided_slice %202 {offsets = [0, 0], sizes = [8, 128], strides = [1, 1]} : vector<8x384xf32> to vector<8x128xf32>
    %205 = arith.addf %203, %204 : vector<8x128xf32>
    %206 = arith.negf %205 : vector<8x128xf32>
    %207 = math.exp %206 : vector<8x128xf32>
    %cst_63 = arith.constant 1.000000e+00 : f32
    %208 = vector.broadcast %cst_63 : f32 to vector<8x128xf32>
    %209 = arith.addf %208, %207 : vector<8x128xf32>
    %210 = arith.divf %208, %209 : vector<8x128xf32>
    %211 = vector.extract_strided_slice %199 {offsets = [0, 128], sizes = [8, 128], strides = [1, 1]} : vector<8x384xf32> to vector<8x128xf32>
    %212 = vector.extract_strided_slice %202 {offsets = [0, 128], sizes = [8, 128], strides = [1, 1]} : vector<8x384xf32> to vector<8x128xf32>
    %213 = arith.addf %211, %212 : vector<8x128xf32>
    %214 = arith.negf %213 : vector<8x128xf32>
    %215 = math.exp %214 : vector<8x128xf32>
    %cst_64 = arith.constant 1.000000e+00 : f32
    %216 = vector.broadcast %cst_64 : f32 to vector<8x128xf32>
    %217 = arith.addf %216, %215 : vector<8x128xf32>
    %218 = arith.divf %216, %217 : vector<8x128xf32>
    %219 = vector.extract_strided_slice %199 {offsets = [0, 256], sizes = [8, 128], strides = [1, 1]} : vector<8x384xf32> to vector<8x128xf32>
    %220 = vector.extract_strided_slice %202 {offsets = [0, 256], sizes = [8, 128], strides = [1, 1]} : vector<8x384xf32> to vector<8x128xf32>
    %221 = arith.mulf %210, %220 : vector<8x128xf32>
    %222 = arith.addf %219, %221 : vector<8x128xf32>
    %223 = math.tanh %222 : vector<8x128xf32>
    %cst_65 = arith.constant 1.000000e+00 : f32
    %224 = vector.broadcast %cst_65 : f32 to vector<8x128xf32>
    %225 = arith.subf %224, %218 : vector<8x128xf32>
    %226 = arith.mulf %225, %223 : vector<8x128xf32>
    %227 = arith.mulf %218, %192 : vector<8x128xf32>
    %228 = arith.addf %226, %227 : vector<8x128xf32>
    %229 = arith.index_cast %c5_i32 : i32 to index
    %c0_66 = arith.constant 0 : index
    %c0_67 = arith.constant 0 : index
    %230 = vector.load %arg8[%229, %c0_66, %c0_67] : memref<8x8x128xf32, #tpu.memory_space<vmem>>, vector<1x8x128xf32>
    %231 = vector.shape_cast %230 : vector<1x8x128xf32> to vector<8x128xf32>
    %232 = vector.shape_cast %228 : vector<8x128xf32> to vector<1x8x128xf32>
    tpu.vector_store %arg8[%229, %c0_66, %c0_67], %232 {strides = array<i32>} : memref<8x8x128xf32, #tpu.memory_space<vmem>>, vector<1x8x128xf32>,
    %c6_i32 = arith.constant 6 : i32
    %233 = arith.index_cast %c6_i32 : i32 to index
    %c0_68 = arith.constant 0 : index
    %c0_69 = arith.constant 0 : index
    %234 = vector.load %arg10[%233, %c0_68, %c0_69] : memref<8x8x384xf32, #tpu.memory_space<vmem>>, vector<1x8x384xf32>
    %235 = vector.shape_cast %234 : vector<1x8x384xf32> to vector<8x384xf32>
    %cst_70 = arith.constant dense<0.000000e+00> : vector<8x384xf32>
    %236 = tpu.matmul %228, %15, %cst_70 {dimension_numbers = #tpu.dot_dimension_numbers<[1], [0], [0], [1], [0, 0, 1, 1], [], []>} : vector<8x128xf32>, vector<128x384xf32>, vector<8x384xf32> -> vector<8x384xf32>
    %237 = vector.broadcast %16 : vector<1x384xf32> to vector<8x384xf32>
    %238 = arith.addf %236, %237 : vector<8x384xf32>
    %239 = vector.extract_strided_slice %235 {offsets = [0, 0], sizes = [8, 128], strides = [1, 1]} : vector<8x384xf32> to vector<8x128xf32>
    %240 = vector.extract_strided_slice %238 {offsets = [0, 0], sizes = [8, 128], strides = [1, 1]} : vector<8x384xf32> to vector<8x128xf32>
    %241 = arith.addf %239, %240 : vector<8x128xf32>
    %242 = arith.negf %241 : vector<8x128xf32>
    %243 = math.exp %242 : vector<8x128xf32>
    %cst_71 = arith.constant 1.000000e+00 : f32
    %244 = vector.broadcast %cst_71 : f32 to vector<8x128xf32>
    %245 = arith.addf %244, %243 : vector<8x128xf32>
    %246 = arith.divf %244, %245 : vector<8x128xf32>
    %247 = vector.extract_strided_slice %235 {offsets = [0, 128], sizes = [8, 128], strides = [1, 1]} : vector<8x384xf32> to vector<8x128xf32>
    %248 = vector.extract_strided_slice %238 {offsets = [0, 128], sizes = [8, 128], strides = [1, 1]} : vector<8x384xf32> to vector<8x128xf32>
    %249 = arith.addf %247, %248 : vector<8x128xf32>
    %250 = arith.negf %249 : vector<8x128xf32>
    %251 = math.exp %250 : vector<8x128xf32>
    %cst_72 = arith.constant 1.000000e+00 : f32
    %252 = vector.broadcast %cst_72 : f32 to vector<8x128xf32>
    %253 = arith.addf %252, %251 : vector<8x128xf32>
    %254 = arith.divf %252, %253 : vector<8x128xf32>
    %255 = vector.extract_strided_slice %235 {offsets = [0, 256], sizes = [8, 128], strides = [1, 1]} : vector<8x384xf32> to vector<8x128xf32>
    %256 = vector.extract_strided_slice %238 {offsets = [0, 256], sizes = [8, 128], strides = [1, 1]} : vector<8x384xf32> to vector<8x128xf32>
    %257 = arith.mulf %246, %256 : vector<8x128xf32>
    %258 = arith.addf %255, %257 : vector<8x128xf32>
    %259 = math.tanh %258 : vector<8x128xf32>
    %cst_73 = arith.constant 1.000000e+00 : f32
    %260 = vector.broadcast %cst_73 : f32 to vector<8x128xf32>
    %261 = arith.subf %260, %254 : vector<8x128xf32>
    %262 = arith.mulf %261, %259 : vector<8x128xf32>
    %263 = arith.mulf %254, %228 : vector<8x128xf32>
    %264 = arith.addf %262, %263 : vector<8x128xf32>
    %265 = arith.index_cast %c6_i32 : i32 to index
    %c0_74 = arith.constant 0 : index
    %c0_75 = arith.constant 0 : index
    %266 = vector.load %arg8[%265, %c0_74, %c0_75] : memref<8x8x128xf32, #tpu.memory_space<vmem>>, vector<1x8x128xf32>
    %267 = vector.shape_cast %266 : vector<1x8x128xf32> to vector<8x128xf32>
    %268 = vector.shape_cast %264 : vector<8x128xf32> to vector<1x8x128xf32>
    tpu.vector_store %arg8[%265, %c0_74, %c0_75], %268 {strides = array<i32>} : memref<8x8x128xf32, #tpu.memory_space<vmem>>, vector<1x8x128xf32>,
    %c7_i32 = arith.constant 7 : i32
    %269 = arith.index_cast %c7_i32 : i32 to index
    %c0_76 = arith.constant 0 : index
    %c0_77 = arith.constant 0 : index
    %270 = vector.load %arg10[%269, %c0_76, %c0_77] : memref<8x8x384xf32, #tpu.memory_space<vmem>>, vector<1x8x384xf32>
    %271 = vector.shape_cast %270 : vector<1x8x384xf32> to vector<8x384xf32>
    %cst_78 = arith.constant dense<0.000000e+00> : vector<8x384xf32>
    %272 = tpu.matmul %264, %15, %cst_78 {dimension_numbers = #tpu.dot_dimension_numbers<[1], [0], [0], [1], [0, 0, 1, 1], [], []>} : vector<8x128xf32>, vector<128x384xf32>, vector<8x384xf32> -> vector<8x384xf32>
    %273 = vector.broadcast %16 : vector<1x384xf32> to vector<8x384xf32>
    %274 = arith.addf %272, %273 : vector<8x384xf32>
    %275 = vector.extract_strided_slice %271 {offsets = [0, 0], sizes = [8, 128], strides = [1, 1]} : vector<8x384xf32> to vector<8x128xf32>
    %276 = vector.extract_strided_slice %274 {offsets = [0, 0], sizes = [8, 128], strides = [1, 1]} : vector<8x384xf32> to vector<8x128xf32>
    %277 = arith.addf %275, %276 : vector<8x128xf32>
    %278 = arith.negf %277 : vector<8x128xf32>
    %279 = math.exp %278 : vector<8x128xf32>
    %cst_79 = arith.constant 1.000000e+00 : f32
    %280 = vector.broadcast %cst_79 : f32 to vector<8x128xf32>
    %281 = arith.addf %280, %279 : vector<8x128xf32>
    %282 = arith.divf %280, %281 : vector<8x128xf32>
    %283 = vector.extract_strided_slice %271 {offsets = [0, 128], sizes = [8, 128], strides = [1, 1]} : vector<8x384xf32> to vector<8x128xf32>
    %284 = vector.extract_strided_slice %274 {offsets = [0, 128], sizes = [8, 128], strides = [1, 1]} : vector<8x384xf32> to vector<8x128xf32>
    %285 = arith.addf %283, %284 : vector<8x128xf32>
    %286 = arith.negf %285 : vector<8x128xf32>
    %287 = math.exp %286 : vector<8x128xf32>
    %cst_80 = arith.constant 1.000000e+00 : f32
    %288 = vector.broadcast %cst_80 : f32 to vector<8x128xf32>
    %289 = arith.addf %288, %287 : vector<8x128xf32>
    %290 = arith.divf %288, %289 : vector<8x128xf32>
    %291 = vector.extract_strided_slice %271 {offsets = [0, 256], sizes = [8, 128], strides = [1, 1]} : vector<8x384xf32> to vector<8x128xf32>
    %292 = vector.extract_strided_slice %274 {offsets = [0, 256], sizes = [8, 128], strides = [1, 1]} : vector<8x384xf32> to vector<8x128xf32>
    %293 = arith.mulf %282, %292 : vector<8x128xf32>
    %294 = arith.addf %291, %293 : vector<8x128xf32>
    %295 = math.tanh %294 : vector<8x128xf32>
    %cst_81 = arith.constant 1.000000e+00 : f32
    %296 = vector.broadcast %cst_81 : f32 to vector<8x128xf32>
    %297 = arith.subf %296, %290 : vector<8x128xf32>
    %298 = arith.mulf %297, %295 : vector<8x128xf32>
    %299 = arith.mulf %290, %264 : vector<8x128xf32>
    %300 = arith.addf %298, %299 : vector<8x128xf32>
    %301 = arith.index_cast %c7_i32 : i32 to index
    %c0_82 = arith.constant 0 : index
    %c0_83 = arith.constant 0 : index
    %302 = vector.load %arg8[%301, %c0_82, %c0_83] : memref<8x8x128xf32, #tpu.memory_space<vmem>>, vector<1x8x128xf32>
    %303 = vector.shape_cast %302 : vector<1x8x128xf32> to vector<8x128xf32>
    %304 = vector.shape_cast %300 : vector<8x128xf32> to vector<1x8x128xf32>
    tpu.vector_store %arg8[%301, %c0_82, %c0_83], %304 {strides = array<i32>} : memref<8x8x128xf32, #tpu.memory_space<vmem>>, vector<1x8x128xf32>,
    %c8_i32 = arith.constant 8 : i32
    %c0_84 = arith.constant 0 : index
    %c0_85 = arith.constant 0 : index
    %305 = vector.load %arg9[%c0_84, %c0_85] : memref<8x128xf32, #tpu.memory_space<vmem>>, vector<8x128xf32>
    tpu.vector_store %arg9[%c0_84, %c0_85], %300 {strides = array<i32>} : memref<8x128xf32, #tpu.memory_space<vmem>>, vector<8x128xf32>,
    return
  }
}

</mosaic_0001>

<llo_original>
// kernel: rnn_decoder_forward.3
$region0: #{rnn_decoder_forward.3}
  #allocation0 [shape = 'u32[]', space=smem, size = 0x4, offset = 0x4, fixed_abs, tag = 'smem constant byte address 0x4 - core index']
  #allocation1 [shape = 'u32[144,128]{1,0:T(1,128)}', space=vmem, size = 0x12000, scoped, tag = 'internal scratch']
  %s0 = inlined_call_operand.vmem [shape: f32[8,8,128], index: 0, kind: input, shape index: {}]
  %s1 = inlined_call_operand.vmem [shape: bf16[128,128], index: 1, kind: input, shape index: {}]
  %s2 = inlined_call_operand.vmem [shape: f32[1,128], index: 2, kind: input, shape index: {}]
  %s3 = inlined_call_operand.vmem [shape: f32[8,8,128], index: 3, kind: output, shape index: {}]
  %s4 = sld [smem:[#allocation0]]
  $region22: #{rnn_decoder_forward.3} parent=0
    _
  %s6 = ssub.s32 1, %s4
  %s7 = scalar_select 0, %s6, %s4
  // Predicated region
  $region2: #{rnn_decoder_forward.3} parent=0 // pred_check
    _
  $region3: #{rnn_decoder_forward.3} parent=0 // pred_check_branch
    %9 = sbr.rel (0) target = $region5
  $region4: #{rnn_decoder_forward.3} parent=0 // pred_region
    _
  $region5: #{rnn_decoder_forward.3} parent=0 // pred_fallthru
    _
  // Predicated region
  $region6: #{rnn_decoder_forward.3} parent=0 // pred_check
    _
  $region7: #{rnn_decoder_forward.3} parent=0 // pred_check_branch
    %11 = sbr.rel (0) target = $region9
  $region8: #{rnn_decoder_forward.3} parent=0 // pred_region
    _
  $region9: #{rnn_decoder_forward.3} parent=0 // pred_fallthru
    _
  // Predicated region
  $region10: #{rnn_decoder_forward.3} parent=0 // pred_check
    _
  $region11: #{rnn_decoder_forward.3} parent=0 // pred_check_branch
    %13 = sbr.rel (0) target = $region13
  $region12: #{rnn_decoder_forward.3} parent=0 // pred_region
    _
  $region13: #{rnn_decoder_forward.3} parent=0 // pred_fallthru
    _
  %v15 = vld [vmem:[%s0] sm:$0xff]
  %v16 = vld [vmem:[%s0 + $0x8] sm:$0xff]
  %v17 = vld [vmem:[%s0 + $0x10] sm:$0xff]
  %v18 = vld [vmem:[%s0 + $0x18] sm:$0xff]
  %v19 = vld [vmem:[%s0 + $0x20] sm:$0xff]
  %v20 = vld [vmem:[%s0 + $0x28] sm:$0xff]
  %v21 = vld [vmem:[%s0 + $0x30] sm:$0xff]
  %v22 = vld [vmem:[%s0 + $0x38] sm:$0xff]
  %v23 = vpack.c.bf16 %v16, %v15
  %v24 = vpack.c.bf16 %v18, %v17
  %v25 = vpack.c.bf16 %v20, %v19
  %v26 = vpack.c.bf16 %v22, %v21
  %v27 = vld [vmem:[%s1] sm:$0xf]
  %v28 = vld [vmem:[%s1 + $0x4] sm:$0xf]
  %v29 = vld [vmem:[%s1 + $0x8] sm:$0xf]
  %v30 = vld [vmem:[%s1 + $0xc] sm:$0xf]
  %v31 = vld [vmem:[%s1 + $0x10] sm:$0xf]
  %v32 = vld [vmem:[%s1 + $0x14] sm:$0xf]
  %v33 = vld [vmem:[%s1 + $0x18] sm:$0xf]
  %v34 = vld [vmem:[%s1 + $0x1c] sm:$0xf]
  %v35 = vld [vmem:[%s1 + $0x20] sm:$0xf]
  %v36 = vld [vmem:[%s1 + $0x24] sm:$0xf]
  %v37 = vld [vmem:[%s1 + $0x28] sm:$0xf]
  %v38 = vld [vmem:[%s1 + $0x2c] sm:$0xf]
  %v39 = vld [vmem:[%s1 + $0x30] sm:$0xf]
  %v40 = vld [vmem:[%s1 + $0x34] sm:$0xf]
  %v41 = vld [vmem:[%s1 + $0x38] sm:$0xf]
  %v42 = vld [vmem:[%s1 + $0x3c] sm:$0xf]
  %v43 = vld [vmem:[%s2] sm:$0x1]
  %v45 = vlaneseq
  %v46 = vshrl.u32 %v45, 7
  %v47 = vsub.s32 0, %v46
  %v48 = vrot.slane %v43, %v47
  %v66 = vunpack.c.l.b16 %v27
  %v67 = vunpack.c.l.b16 %v28
  %v68 = vunpack.c.l.b16 %v29
  %v69 = vunpack.c.l.b16 %v30
  %v70 = vunpack.c.l.b16 %v31
  %v71 = vunpack.c.l.b16 %v32
  %v72 = vunpack.c.l.b16 %v33
  %v73 = vunpack.c.l.b16 %v34
  %v74 = vunpack.c.l.b16 %v35
  %v75 = vunpack.c.l.b16 %v36
  %v76 = vunpack.c.l.b16 %v37
  %v77 = vunpack.c.l.b16 %v38
  %v78 = vunpack.c.l.b16 %v39
  %v79 = vunpack.c.l.b16 %v40
  %v80 = vunpack.c.l.b16 %v41
  %v81 = vunpack.c.l.b16 %v42
  %v82 = vpack.c.b16 %v67, %v66
  %v83 = vpack.c.b16 %v69, %v68
  %v84 = vpack.c.b16 %v71, %v70
  %v85 = vpack.c.b16 %v73, %v72
  %v86 = vpack.c.b16 %v75, %v74
  %v87 = vpack.c.b16 %v77, %v76
  %v88 = vpack.c.b16 %v79, %v78
  %v89 = vpack.c.b16 %v81, %v80
  %98 = vmatprep.subr.bf16.mxu0 0
  %99 = vmatpush1.bf16.msra.mxu0 %v82
  %100 = vmatprep.subr.bf16.mxu0 0
  %101 = vmatpush1.bf16.msra.mxu0 %v83
  %102 = vmatprep.subr.bf16.mxu0 0
  %103 = vmatpush1.bf16.msra.mxu0 %v84
  %104 = vmatprep.subr.bf16.mxu0 0
  %105 = vmatpush1.bf16.msra.mxu0 %v85
  %106 = vmatprep.subr.bf16.mxu0 0
  %107 = vmatpush1.bf16.msra.mxu0 %v86
  %108 = vmatprep.subr.bf16.mxu0 0
  %109 = vmatpush1.bf16.msra.mxu0 %v87
  %110 = vmatprep.subr.bf16.mxu0 0
  %111 = vmatpush1.bf16.msra.mxu0 %v88
  %112 = vmatprep.subr.bf16.mxu0 0
  %113 = vmatpush1.bf16.msra.mxu0 %v89
  %114 = vmatprep.subr.bf16.mxu0 0
  %115 = vmatpush1.bf16.msra.mxu0 0
  %116 = vmatprep.subr.bf16.mxu0 0
  %117 = vmatpush1.bf16.msra.mxu0 0
  %118 = vmatprep.subr.bf16.mxu0 0
  %119 = vmatpush1.bf16.msra.mxu0 0
  %120 = vmatprep.subr.bf16.mxu0 0
  %121 = vmatpush1.bf16.msra.mxu0 0
  %122 = vmatprep.subr.bf16.mxu0 0
  %123 = vmatpush1.bf16.msra.mxu0 0
  %124 = vmatprep.subr.bf16.mxu0 0
  %125 = vmatpush1.bf16.msra.mxu0 0
  %126 = vmatprep.subr.bf16.mxu0 0
  %127 = vmatpush1.bf16.msra.mxu0 0
  %128 = vmatprep.subr.bf16.mxu0 0
  %129 = vmatpush1.bf16.msra.mxu0 0
  %130 = vmatprep.mubr.bf16.mxu0 0
  %131 = vmatmul.mubr.bf16.gmra.mrb[0].mxu0 %v23
  %v132 = vpop.f32.mrb[0].mxu0
  %v133 = vadd.f32 %v48, %v132
  %v134 = vpop.f32.mrb[0].mxu0
  %v135 = vpop.f32.mrb[0].mxu0
  %v136 = vadd.f32 %v48, %v135
  %v137 = vpop.f32.mrb[0].mxu0
  %138 = vmatprep.mubr.bf16.mxu0 0
  %139 = vmatmul.mubr.bf16.gmra.mrb[0].mxu0 %v24
  %v140 = vpop.f32.mrb[0].mxu0
  %v141 = vadd.f32 %v48, %v140
  %v142 = vpop.f32.mrb[0].mxu0
  %v143 = vpop.f32.mrb[0].mxu0
  %v144 = vadd.f32 %v48, %v143
  %v145 = vpop.f32.mrb[0].mxu0
  %146 = vmatprep.mubr.bf16.mxu0 0
  %147 = vmatmul.mubr.bf16.gmra.mrb[0].mxu0 %v25
  %v148 = vpop.f32.mrb[0].mxu0
  %v149 = vadd.f32 %v48, %v148
  %v150 = vpop.f32.mrb[0].mxu0
  %v151 = vpop.f32.mrb[0].mxu0
  %v152 = vadd.f32 %v48, %v151
  %v153 = vpop.f32.mrb[0].mxu0
  %154 = vmatprep.mubr.bf16.mxu0 0
  %155 = vmatmul.mubr.bf16.gmra.mrb[0].mxu0 %v26
  %v156 = vpop.f32.mrb[0].mxu0
  %v157 = vadd.f32 %v48, %v156
  %v158 = vpop.f32.mrb[0].mxu0
  %v159 = vpop.f32.mrb[0].mxu0
  %v160 = vadd.f32 %v48, %v159
  %v161 = vpop.f32.mrb[0].mxu0
  %162 = vdwg.mxu0
  %163 = vst [vmem:[%s3] sm:$0xff] %v133
  %164 = vst [vmem:[%s3 + $0x8] sm:$0xff] %v136
  %165 = vst [vmem:[%s3 + $0x10] sm:$0xff] %v141
  %166 = vst [vmem:[%s3 + $0x18] sm:$0xff] %v144
  %167 = vst [vmem:[%s3 + $0x20] sm:$0xff] %v149
  %168 = vst [vmem:[%s3 + $0x28] sm:$0xff] %v152
  %169 = vst [vmem:[%s3 + $0x30] sm:$0xff] %v157
  %170 = vst [vmem:[%s3 + $0x38] sm:$0xff] %v160
  // Predicated region
  $region14: #{rnn_decoder_forward.3} parent=0 // pred_check
    _
  $region15: #{rnn_decoder_forward.3} parent=0 // pred_check_branch
    %172 = sbr.rel (0) target = $region17
  $region16: #{rnn_decoder_forward.3} parent=0 // pred_region
    _
  $region17: #{rnn_decoder_forward.3} parent=0 // pred_fallthru
    _
  // Predicated region
  $region18: #{rnn_decoder_forward.3} parent=0 // pred_check
    _
  $region19: #{rnn_decoder_forward.3} parent=0 // pred_check_branch
    %174 = sbr.rel (0) target = $region21
  $region20: #{rnn_decoder_forward.3} parent=0 // pred_region
    _
  $region21: #{rnn_decoder_forward.3} parent=0 // pred_fallthru
    _

// kernel: rnn_decoder_forward.2
$region0: #{rnn_decoder_forward.2}
  #allocation0 [shape = 'u32[]', space=smem, size = 0x4, offset = 0x4, fixed_abs, tag = 'smem constant byte address 0x4 - core index']
  #allocation1 [shape = 'u32[144,128]{1,0:T(1,128)}', space=vmem, size = 0x12000, scoped, tag = 'internal scratch']
  #allocation2 [shape = 'f32[8,8,384]{2,1,0:T(8,128)}', space=vmem, size = 0x18000, scoped, tag = 'scratch operand']
  %s0 = inlined_call_operand.vmem [shape: f32[8,16], index: 0, kind: input, shape index: {}]
  %s1 = inlined_call_operand.vmem [shape: f32[8,8,32], index: 1, kind: input, shape index: {}]
  %s2 = inlined_call_operand.vmem [shape: f32[16,128], index: 2, kind: input, shape index: {}]
  %s3 = inlined_call_operand.vmem [shape: f32[1,128], index: 3, kind: input, shape index: {}]
  %s4 = inlined_call_operand.vmem [shape: f32[32,384], index: 4, kind: input, shape index: {}]
  %s5 = inlined_call_operand.vmem [shape: f32[1,384], index: 5, kind: input, shape index: {}]
  %s6 = inlined_call_operand.hbm [shape: f32[128,384], index: 6, kind: input, shape index: {}]
  %s7 = inlined_call_operand.vmem [shape: f32[1,384], index: 7, kind: input, shape index: {}]
  %s8 = inlined_call_operand.vmem [shape: f32[8,8,128], index: 8, kind: output, shape index: {0}]
  %s9 = inlined_call_operand.vmem [shape: f32[8,128], index: 9, kind: output, shape index: {1}]
  %10 = xla_tuple %s8, %s9
  %s11 = sld [smem:[#allocation0]]
  $region54: #{rnn_decoder_forward.2} parent=0
    _
  %s13 = ssub.s32 1, %s11
  %s14 = scalar_select 0, %s13, %s11
  $region1: #{rnn_decoder_forward.2} parent=0
    #allocation3 [shape = 'u8[196608]{0}', space=vmem, size = 0x30000, scoped, tag = 'input window, operand 6, single buffered']
    #allocation4 [shape = 's32[1]{0}', space=sflag, size = 0x4, scoped, tag = 'scoped memory for rnn_decoder_forward.2']
    %15 = vsyncpa [#allocation4], 0
    // Predicated region
    $region2: #{rnn_decoder_forward.2} parent=1 // pred_check
      _
    $region3: #{rnn_decoder_forward.2} parent=1 // pred_check_branch
      %17 = sbr.rel (0) target = $region5
    $region4: #{rnn_decoder_forward.2} parent=1 // pred_region
      _
    $region5: #{rnn_decoder_forward.2} parent=1 // pred_fallthru
      _
    // Predicated region
    $region6: #{rnn_decoder_forward.2} parent=1 // pred_check
      _
    $region7: #{rnn_decoder_forward.2} parent=1 // pred_check_branch
      %19 = sbr.rel (0) target = $region9
    $region8: #{rnn_decoder_forward.2} parent=1 // pred_region
      _
    $region9: #{rnn_decoder_forward.2} parent=1 // pred_fallthru
      _
    // Predicated region
    $region10: #{rnn_decoder_forward.2} parent=1 // pred_check
      _
    $region11: #{rnn_decoder_forward.2} parent=1 // pred_check_branch
      %21 = sbr.rel (0) target = $region13
    $region12: #{rnn_decoder_forward.2} parent=1 // pred_region
      _
    $region13: #{rnn_decoder_forward.2} parent=1 // pred_fallthru
      _
    // Predicated region
    $region14: #{rnn_decoder_forward.2} parent=1 // pred_check
      _
    $region15: #{rnn_decoder_forward.2} parent=1 // pred_check_branch
      %23 = sbr.rel (0) target = $region17
    $region16: #{rnn_decoder_forward.2} parent=1 // pred_region
      _
    $region17: #{rnn_decoder_forward.2} parent=1 // pred_fallthru
      _
    // Predicated region
    $region18: #{rnn_decoder_forward.2} parent=1 // pred_check
      _
    $region19: #{rnn_decoder_forward.2} parent=1 // pred_check_branch
      %25 = sbr.rel (0) target = $region21
    $region20: #{rnn_decoder_forward.2} parent=1 // pred_region
      _
    $region21: #{rnn_decoder_forward.2} parent=1 // pred_fallthru
      _
    // Predicated region
    $region22: #{rnn_decoder_forward.2} parent=1 // pred_check
      _
    $region23: #{rnn_decoder_forward.2} parent=1 // pred_check_branch
      %27 = sbr.rel (0) target = $region25
    $region24: #{rnn_decoder_forward.2} parent=1 // pred_region
      _
    $region25: #{rnn_decoder_forward.2} parent=1 // pred_fallthru
      _
    // Predicated region
    $region26: #{rnn_decoder_forward.2} parent=1 // pred_check
      _
    $region27: #{rnn_decoder_forward.2} parent=1 // pred_check_branch
      %29 = sbr.rel (0) target = $region29
    $region28: #{rnn_decoder_forward.2} parent=1 // pred_region
      %s31 = ssub.s32 6144, 6144
      %32 = vsyncadd [#allocation4], %s31
      %s33 = sshll.u32 [#allocation3], 4
      %s34 = int_to_ptr.vmem [resolvable:$true] %s33
      %39 = dma.hbm_to_vmem [thread:$0]  %s6, 6144, %s34, [#allocation4], 384, 384, 24
    $region29: #{rnn_decoder_forward.2} parent=1 // pred_fallthru
      _
    // Predicated region
    $region30: #{rnn_decoder_forward.2} parent=1 // pred_check
      _
    $region31: #{rnn_decoder_forward.2} parent=1 // pred_check_branch
      %41 = sbr.rel (0) target = $region33
    $region32: #{rnn_decoder_forward.2} parent=1 // pred_region
      _
    $region33: #{rnn_decoder_forward.2} parent=1 // pred_fallthru
      _
    // Predicated region
    $region34: #{rnn_decoder_forward.2} parent=1 // pred_check
      _
    $region35: #{rnn_decoder_forward.2} parent=1 // pred_check_branch
      %43 = sbr.rel (0) target = $region37
    $region36: #{rnn_decoder_forward.2} parent=1 // pred_region
      %44 = dma.done [#allocation4], 6144
    $region37: #{rnn_decoder_forward.2} parent=1 // pred_fallthru
      _
    %v45 = vld [vmem:[%s0] sm:$0xff]
    %v46 = vld [vmem:[%s2] sm:$0xff]
    %v47 = vld [vmem:[%s2 + $0x8] sm:$0xff]
    %v48 = vld [vmem:[%s3] sm:$0x1]
    %v50 = vlaneseq
    %v51 = vshrl.u32 %v50, 7
    %v52 = vsub.s32 0, %v51
    %v53 = vrot.slane %v48, %v52
    %vm55 = vcmask 130048
    %v57 = vsel %vm55, %v45, 0
    %59 = vmatprep.subr.mxu0 0.0
    %60 = vmatpush1.msra.mxu0 %v46
    %61 = vmatprep.subr.mxu0 0.0
    %62 = vmatpush1.msra.mxu0 %v47
    %63 = vmatprep.subr.mxu0 0.0
    %64 = vmatpush1.msra.mxu0 0.0
    %65 = vmatprep.subr.mxu0 0.0
    %66 = vmatpush1.msra.mxu0 0.0
    %67 = vmatprep.subr.mxu0 0.0
    %68 = vmatpush1.msra.mxu0 0.0
    %69 = vmatprep.subr.mxu0 0.0
    %70 = vmatpush1.msra.mxu0 0.0
    %71 = vmatprep.subr.mxu0 0.0
    %72 = vmatpush1.msra.mxu0 0.0
    %73 = vmatprep.subr.mxu0 0.0
    %74 = vmatpush1.msra.mxu0 0.0
    %75 = vmatprep.subr.mxu0 0.0
    %76 = vmatpush1.msra.mxu0 0.0
    %77 = vmatprep.subr.mxu0 0.0
    %78 = vmatpush1.msra.mxu0 0.0
    %79 = vmatprep.subr.mxu0 0.0
    %80 = vmatpush1.msra.mxu0 0.0
    %81 = vmatprep.subr.mxu0 0.0
    %82 = vmatpush1.msra.mxu0 0.0
    %83 = vmatprep.subr.mxu0 0.0
    %84 = vmatpush1.msra.mxu0 0.0
    %85 = vmatprep.subr.mxu0 0.0
    %86 = vmatpush1.msra.mxu0 0.0
    %87 = vmatprep.subr.mxu0 0.0
    %88 = vmatpush1.msra.mxu0 0.0
    %89 = vmatprep.subr.mxu0 0.0
    %90 = vmatpush1.msra.mxu0 0.0
    %91 = vmatprep.subr.mxu0 0.0
    %92 = vmatpush1.msra.mxu0 0.0
    %93 = vmatprep.subr.mxu0 0.0
    %94 = vmatpush1.msra.mxu0 0.0
    %95 = vmatprep.subr.mxu0 0.0
    %96 = vmatpush1.msra.mxu0 0.0
    %97 = vmatprep.subr.mxu0 0.0
    %98 = vmatpush1.msra.mxu0 0.0
    %99 = vmatprep.subr.mxu0 0.0
    %100 = vmatpush1.msra.mxu0 0.0
    %101 = vmatprep.subr.mxu0 0.0
    %102 = vmatpush1.msra.mxu0 0.0
    %103 = vmatprep.subr.mxu0 0.0
    %104 = vmatpush1.msra.mxu0 0.0
    %105 = vmatprep.subr.mxu0 0.0
    %106 = vmatpush1.msra.mxu0 0.0
    %107 = vmatprep.subr.mxu0 0.0
    %108 = vmatpush1.msra.mxu0 0.0
    %109 = vmatprep.subr.mxu0 0.0
    %110 = vmatpush1.msra.mxu0 0.0
    %111 = vmatprep.subr.mxu0 0.0
    %112 = vmatpush1.msra.mxu0 0.0
    %113 = vmatprep.subr.mxu0 0.0
    %114 = vmatpush1.msra.mxu0 0.0
    %115 = vmatprep.subr.mxu0 0.0
    %116 = vmatpush1.msra.mxu0 0.0
    %117 = vmatprep.subr.mxu0 0.0
    %118 = vmatpush1.msra.mxu0 0.0
    %119 = vmatprep.subr.mxu0 0.0
    %120 = vmatpush1.msra.mxu0 0.0
    %121 = vmatprep.subr.mxu0 0.0
    %122 = vmatpush1.msra.mxu0 0.0
    %123 = vmatprep.mubr.f32.mxu0 0.0
    %124 = vmatmul.mubr.f32.gmra.mrb[0].mxu0 %v57
    %v125 = vpop.f32.mrb[0].mxu0
    %v126 = vadd.f32 %v53, %v125
    %v127 = vpop.f32.mrb[0].mxu0
    %128 = vdwg.mxu0
    %v129 = vld [vmem:[%s1] sm:$0xff]
    %v130 = vld [vmem:[%s1 + $0x8] sm:$0xff]
    %v131 = vld [vmem:[%s1 + $0x10] sm:$0xff]
    %v132 = vld [vmem:[%s1 + $0x18] sm:$0xff]
    %v133 = vld [vmem:[%s1 + $0x20] sm:$0xff]
    %v134 = vld [vmem:[%s1 + $0x28] sm:$0xff]
    %v135 = vld [vmem:[%s1 + $0x30] sm:$0xff]
    %v136 = vld [vmem:[%s1 + $0x38] sm:$0xff]
    %v137 = vld [vmem:[%s4] sm:$0xff]
    %v138 = vld [vmem:[%s4 + $0x8] sm:$0xff]
    %v139 = vld [vmem:[%s4 + $0x10] sm:$0xff]
    %v140 = vld [vmem:[%s4 + $0x18] sm:$0xff]
    %v141 = vld [vmem:[%s4 + $0x20] sm:$0xff]
    %v142 = vld [vmem:[%s4 + $0x28] sm:$0xff]
    %v143 = vld [vmem:[%s4 + $0x30] sm:$0xff]
    %v144 = vld [vmem:[%s4 + $0x38] sm:$0xff]
    %v145 = vld [vmem:[%s4 + $0x40] sm:$0xff]
    %v146 = vld [vmem:[%s4 + $0x48] sm:$0xff]
    %v147 = vld [vmem:[%s4 + $0x50] sm:$0xff]
    %v148 = vld [vmem:[%s4 + $0x58] sm:$0xff]
    %v149 = vld [vmem:[%s5] sm:$0x7]
    %v151 = vlaneseq
    %v152 = vshrl.u32 %v151, 7
    %v153 = vsub.s32 0, %v152
    %v154 = vrot.slane %v149, %v153
    %v155 = vlaneseq
    %v156 = vshrl.u32 %v155, 7
    %v157 = vsub.s32 1, %v156
    %v158 = vrot.slane %v149, %v157
    %v159 = vlaneseq
    %v160 = vshrl.u32 %v159, 7
    %v161 = vsub.s32 2, %v160
    %v162 = vrot.slane %v149, %v161
    %vm166 = vcmask 261120
    %v168 = vsel %vm166, %v129, 0
    %v171 = vsel %vm166, %v130, 0
    %v174 = vsel %vm166, %v131, 0
    %v177 = vsel %vm166, %v132, 0
    %v180 = vsel %vm166, %v133, 0
    %v183 = vsel %vm166, %v134, 0
    %v186 = vsel %vm166, %v135, 0
    %v189 = vsel %vm166, %v136, 0
    %191 = vmatprep.subr.mxu0 %v138
    %192 = vmatpush1.msra.mxu0 %v137
    %193 = vmatprep.subr.mxu0 %v141
    %194 = vmatpush1.msra.mxu0 %v140
    %195 = vmatprep.subr.mxu0 %v144
    %196 = vmatpush1.msra.mxu0 %v143
    %197 = vmatprep.subr.mxu0 %v147
    %198 = vmatpush1.msra.mxu0 %v146
    %199 = vmatprep.subr.mxu0 0.0
    %200 = vmatpush1.msra.mxu0 0.0
    %201 = vmatprep.subr.mxu0 0.0
    %202 = vmatpush1.msra.mxu0 0.0
    %203 = vmatprep.subr.mxu0 0.0
    %204 = vmatpush1.msra.mxu0 0.0
    %205 = vmatprep.subr.mxu0 0.0
    %206 = vmatpush1.msra.mxu0 0.0
    %207 = vmatprep.subr.mxu0 0.0
    %208 = vmatpush1.msra.mxu0 0.0
    %209 = vmatprep.subr.mxu0 0.0
    %210 = vmatpush1.msra.mxu0 0.0
    %211 = vmatprep.subr.mxu0 0.0
    %212 = vmatpush1.msra.mxu0 0.0
    %213 = vmatprep.subr.mxu0 0.0
    %214 = vmatpush1.msra.mxu0 0.0
    %215 = vmatprep.subr.mxu0 0.0
    %216 = vmatpush1.msra.mxu0 0.0
    %217 = vmatprep.subr.mxu0 0.0
    %218 = vmatpush1.msra.mxu0 0.0
    %219 = vmatprep.subr.mxu0 0.0
    %220 = vmatpush1.msra.mxu0 0.0
    %221 = vmatprep.subr.mxu0 0.0
    %222 = vmatpush1.msra.mxu0 0.0
    %223 = vmatprep.subr.mxu0 0.0
    %224 = vmatpush1.msra.mxu0 0.0
    %225 = vmatprep.subr.mxu0 0.0
    %226 = vmatpush1.msra.mxu0 0.0
    %227 = vmatprep.subr.mxu0 0.0
    %228 = vmatpush1.msra.mxu0 0.0
    %229 = vmatprep.subr.mxu0 0.0
    %230 = vmatpush1.msra.mxu0 0.0
    %231 = vmatprep.subr.mxu0 0.0
    %232 = vmatpush1.msra.mxu0 0.0
    %233 = vmatprep.subr.mxu0 0.0
    %234 = vmatpush1.msra.mxu0 0.0
    %235 = vmatprep.subr.mxu0 0.0
    %236 = vmatpush1.msra.mxu0 0.0
    %237 = vmatprep.subr.mxu0 0.0
    %238 = vmatpush1.msra.mxu0 0.0
    %239 = vmatprep.subr.mxu0 0.0
    %240 = vmatpush1.msra.mxu0 0.0
    %241 = vmatprep.subr.mxu0 0.0
    %242 = vmatpush1.msra.mxu0 0.0
    %243 = vmatprep.subr.mxu0 0.0
    %244 = vmatpush1.msra.mxu0 0.0
    %245 = vmatprep.subr.mxu0 0.0
    %246 = vmatpush1.msra.mxu0 0.0
    %247 = vmatprep.subr.mxu0 0.0
    %248 = vmatpush1.msra.mxu0 0.0
    %249 = vmatprep.subr.mxu0 0.0
    %250 = vmatpush1.msra.mxu0 0.0
    %251 = vmatprep.subr.mxu0 0.0
    %252 = vmatpush1.msra.mxu0 0.0
    %253 = vmatprep.subr.mxu0 0.0
    %254 = vmatpush1.msra.mxu0 0.0
    %255 = vmatprep.mubr.f32.mxu0 0.0
    %256 = vmatmul.mubr.f32.gmra.mrb[0].mxu0 %v168
    %v257 = vpop.f32.mrb[0].mxu0
    %v258 = vadd.f32 %v154, %v257
    %v259 = vpop.f32.mrb[0].mxu0
    %v260 = vadd.f32 %v158, %v259
    %261 = vmatprep.mubr.f32.mxu0 0.0
    %262 = vmatmul.mubr.f32.gmra.mrb[0].mxu0 %v171
    %v263 = vpop.f32.mrb[0].mxu0
    %v264 = vadd.f32 %v154, %v263
    %v265 = vpop.f32.mrb[0].mxu0
    %v266 = vadd.f32 %v158, %v265
    %267 = vmatprep.mubr.f32.mxu0 0.0
    %268 = vmatmul.mubr.f32.gmra.mrb[0].mxu0 %v174
    %v269 = vpop.f32.mrb[0].mxu0
    %v270 = vadd.f32 %v154, %v269
    %v271 = vpop.f32.mrb[0].mxu0
    %v272 = vadd.f32 %v158, %v271
    %273 = vmatprep.mubr.f32.mxu0 0.0
    %274 = vmatmul.mubr.f32.gmra.mrb[0].mxu0 %v177
    %v275 = vpop.f32.mrb[0].mxu0
    %v276 = vadd.f32 %v154, %v275
    %v277 = vpop.f32.mrb[0].mxu0
    %v278 = vadd.f32 %v158, %v277
    %279 = vmatprep.mubr.f32.mxu0 0.0
    %280 = vmatmul.mubr.f32.gmra.mrb[0].mxu0 %v180
    %v281 = vpop.f32.mrb[0].mxu0
    %v282 = vadd.f32 %v154, %v281
    %v283 = vpop.f32.mrb[0].mxu0
    %v284 = vadd.f32 %v158, %v283
    %285 = vmatprep.mubr.f32.mxu0 0.0
    %286 = vmatmul.mubr.f32.gmra.mrb[0].mxu0 %v183
    %v287 = vpop.f32.mrb[0].mxu0
    %v288 = vadd.f32 %v154, %v287
    %v289 = vpop.f32.mrb[0].mxu0
    %v290 = vadd.f32 %v158, %v289
    %291 = vmatprep.mubr.f32.mxu0 0.0
    %292 = vmatmul.mubr.f32.gmra.mrb[0].mxu0 %v186
    %v293 = vpop.f32.mrb[0].mxu0
    %v294 = vadd.f32 %v154, %v293
    %v295 = vpop.f32.mrb[0].mxu0
    %v296 = vadd.f32 %v158, %v295
    %297 = vmatprep.mubr.f32.mxu0 0.0
    %298 = vmatmul.mubr.f32.gmra.mrb[0].mxu0 %v189
    %v299 = vpop.f32.mrb[0].mxu0
    %v300 = vadd.f32 %v154, %v299
    %v301 = vpop.f32.mrb[0].mxu0
    %v302 = vadd.f32 %v158, %v301
    %303 = vdwg.mxu0
    %304 = vmatprep.subr.mxu0 0.0
    %305 = vmatpush1.msra.mxu0 %v139
    %306 = vmatprep.subr.mxu0 0.0
    %307 = vmatpush1.msra.mxu0 %v142
    %308 = vmatprep.subr.mxu0 0.0
    %309 = vmatpush1.msra.mxu0 %v145
    %310 = vmatprep.subr.mxu0 0.0
    %311 = vmatpush1.msra.mxu0 %v148
    %312 = vmatprep.subr.mxu0 0.0
    %313 = vmatpush1.msra.mxu0 0.0
    %314 = vmatprep.subr.mxu0 0.0
    %315 = vmatpush1.msra.mxu0 0.0
    %316 = vmatprep.subr.mxu0 0.0
    %317 = vmatpush1.msra.mxu0 0.0
    %318 = vmatprep.subr.mxu0 0.0
    %319 = vmatpush1.msra.mxu0 0.0
    %320 = vmatprep.subr.mxu0 0.0
    %321 = vmatpush1.msra.mxu0 0.0
    %322 = vmatprep.subr.mxu0 0.0
    %323 = vmatpush1.msra.mxu0 0.0
    %324 = vmatprep.subr.mxu0 0.0
    %325 = vmatpush1.msra.mxu0 0.0
    %326 = vmatprep.subr.mxu0 0.0
    %327 = vmatpush1.msra.mxu0 0.0
    %328 = vmatprep.subr.mxu0 0.0
    %329 = vmatpush1.msra.mxu0 0.0
    %330 = vmatprep.subr.mxu0 0.0
    %331 = vmatpush1.msra.mxu0 0.0
    %332 = vmatprep.subr.mxu0 0.0
    %333 = vmatpush1.msra.mxu0 0.0
    %334 = vmatprep.subr.mxu0 0.0
    %335 = vmatpush1.msra.mxu0 0.0
    %336 = vmatprep.subr.mxu0 0.0
    %337 = vmatpush1.msra.mxu0 0.0
    %338 = vmatprep.subr.mxu0 0.0
    %339 = vmatpush1.msra.mxu0 0.0
    %340 = vmatprep.subr.mxu0 0.0
    %341 = vmatpush1.msra.mxu0 0.0
    %342 = vmatprep.subr.mxu0 0.0
    %343 = vmatpush1.msra.mxu0 0.0
    %344 = vmatprep.subr.mxu0 0.0
    %345 = vmatpush1.msra.mxu0 0.0
    %346 = vmatprep.subr.mxu0 0.0
    %347 = vmatpush1.msra.mxu0 0.0
    %348 = vmatprep.subr.mxu0 0.0
    %349 = vmatpush1.msra.mxu0 0.0
    %350 = vmatprep.subr.mxu0 0.0
    %351 = vmatpush1.msra.mxu0 0.0
    %352 = vmatprep.subr.mxu0 0.0
    %353 = vmatpush1.msra.mxu0 0.0
    %354 = vmatprep.subr.mxu0 0.0
    %355 = vmatpush1.msra.mxu0 0.0
    %356 = vmatprep.subr.mxu0 0.0
    %357 = vmatpush1.msra.mxu0 0.0
    %358 = vmatprep.subr.mxu0 0.0
    %359 = vmatpush1.msra.mxu0 0.0
    %360 = vmatprep.subr.mxu0 0.0
    %361 = vmatpush1.msra.mxu0 0.0
    %362 = vmatprep.subr.mxu0 0.0
    %363 = vmatpush1.msra.mxu0 0.0
    %364 = vmatprep.subr.mxu0 0.0
    %365 = vmatpush1.msra.mxu0 0.0
    %366 = vmatprep.subr.mxu0 0.0
    %367 = vmatpush1.msra.mxu0 0.0
    %368 = vmatprep.mubr.f32.mxu0 0.0
    %369 = vmatmul.mubr.f32.gmra.mrb[0].mxu0 %v168
    %v370 = vpop.f32.mrb[0].mxu0
    %v371 = vadd.f32 %v162, %v370
    %v372 = vpop.f32.mrb[0].mxu0
    %373 = vmatprep.mubr.f32.mxu0 0.0
    %374 = vmatmul.mubr.f32.gmra.mrb[0].mxu0 %v171
    %v375 = vpop.f32.mrb[0].mxu0
    %v376 = vadd.f32 %v162, %v375
    %v377 = vpop.f32.mrb[0].mxu0
    %378 = vmatprep.mubr.f32.mxu0 0.0
    %379 = vmatmul.mubr.f32.gmra.mrb[0].mxu0 %v174
    %v380 = vpop.f32.mrb[0].mxu0
    %v381 = vadd.f32 %v162, %v380
    %v382 = vpop.f32.mrb[0].mxu0
    %383 = vmatprep.mubr.f32.mxu0 0.0
    %384 = vmatmul.mubr.f32.gmra.mrb[0].mxu0 %v177
    %v385 = vpop.f32.mrb[0].mxu0
    %v386 = vadd.f32 %v162, %v385
    %v387 = vpop.f32.mrb[0].mxu0
    %388 = vmatprep.mubr.f32.mxu0 0.0
    %389 = vmatmul.mubr.f32.gmra.mrb[0].mxu0 %v180
    %v390 = vpop.f32.mrb[0].mxu0
    %v391 = vadd.f32 %v162, %v390
    %v392 = vpop.f32.mrb[0].mxu0
    %393 = vmatprep.mubr.f32.mxu0 0.0
    %394 = vmatmul.mubr.f32.gmra.mrb[0].mxu0 %v183
    %v395 = vpop.f32.mrb[0].mxu0
    %v396 = vadd.f32 %v162, %v395
    %v397 = vpop.f32.mrb[0].mxu0
    %398 = vmatprep.mubr.f32.mxu0 0.0
    %399 = vmatmul.mubr.f32.gmra.mrb[0].mxu0 %v186
    %v400 = vpop.f32.mrb[0].mxu0
    %v401 = vadd.f32 %v162, %v400
    %v402 = vpop.f32.mrb[0].mxu0
    %403 = vmatprep.mubr.f32.mxu0 0.0
    %404 = vmatmul.mubr.f32.gmra.mrb[0].mxu0 %v189
    %v405 = vpop.f32.mrb[0].mxu0
    %v406 = vadd.f32 %v162, %v405
    %v407 = vpop.f32.mrb[0].mxu0
    %408 = vdwg.mxu0
    %409 = vst [vmem:[#allocation2] sm:$0xff] %v258
    %410 = vst [vmem:[#allocation2 + $0x8] sm:$0xff] %v260
    %411 = vst [vmem:[#allocation2 + $0x10] sm:$0xff] %v371
    %412 = vst [vmem:[#allocation2 + $0x18] sm:$0xff] %v264
    %413 = vst [vmem:[#allocation2 + $0x20] sm:$0xff] %v266
    %414 = vst [vmem:[#allocation2 + $0x28] sm:$0xff] %v376
    %415 = vst [vmem:[#allocation2 + $0x30] sm:$0xff] %v270
    %416 = vst [vmem:[#allocation2 + $0x38] sm:$0xff] %v272
    %417 = vst [vmem:[#allocation2 + $0x40] sm:$0xff] %v381
    %418 = vst [vmem:[#allocation2 + $0x48] sm:$0xff] %v276
    %419 = vst [vmem:[#allocation2 + $0x50] sm:$0xff] %v278
    %420 = vst [vmem:[#allocation2 + $0x58] sm:$0xff] %v386
    %421 = vst [vmem:[#allocation2 + $0x60] sm:$0xff] %v282
    %422 = vst [vmem:[#allocation2 + $0x68] sm:$0xff] %v284
    %423 = vst [vmem:[#allocation2 + $0x70] sm:$0xff] %v391
    %424 = vst [vmem:[#allocation2 + $0x78] sm:$0xff] %v288
    %425 = vst [vmem:[#allocation2 + $0x80] sm:$0xff] %v290
    %426 = vst [vmem:[#allocation2 + $0x88] sm:$0xff] %v396
    %427 = vst [vmem:[#allocation2 + $0x90] sm:$0xff] %v294
    %428 = vst [vmem:[#allocation2 + $0x98] sm:$0xff] %v296
    %429 = vst [vmem:[#allocation2 + $0xa0] sm:$0xff] %v401
    %430 = vst [vmem:[#allocation2 + $0xa8] sm:$0xff] %v300
    %431 = vst [vmem:[#allocation2 + $0xb0] sm:$0xff] %v302
    %432 = vst [vmem:[#allocation2 + $0xb8] sm:$0xff] %v406
    %v433 = vld [vmem:[#allocation3] sm:$0xff]
    %v434 = vld [vmem:[#allocation3 + $0x8] sm:$0xff]
    %v435 = vld [vmem:[#allocation3 + $0x10] sm:$0xff]
    %v436 = vld [vmem:[#allocation3 + $0x18] sm:$0xff]
    %v437 = vld [vmem:[#allocation3 + $0x20] sm:$0xff]
    %v438 = vld [vmem:[#allocation3 + $0x28] sm:$0xff]
    %v439 = vld [vmem:[#allocation3 + $0x30] sm:$0xff]
    %v440 = vld [vmem:[#allocation3 + $0x38] sm:$0xff]
    %v441 = vld [vmem:[#allocation3 + $0x40] sm:$0xff]
    %v442 = vld [vmem:[#allocation3 + $0x48] sm:$0xff]
    %v443 = vld [vmem:[#allocation3 + $0x50] sm:$0xff]
    %v444 = vld [vmem:[#allocation3 + $0x58] sm:$0xff]
    %v445 = vld [vmem:[#allocation3 + $0x60] sm:$0xff]
    %v446 = vld [vmem:[#allocation3 + $0x68] sm:$0xff]
    %v447 = vld [vmem:[#allocation3 + $0x70] sm:$0xff]
    %v448 = vld [vmem:[#allocation3 + $0x78] sm:$0xff]
    %v449 = vld [vmem:[#allocation3 + $0x80] sm:$0xff]
    %v450 = vld [vmem:[#allocation3 + $0x88] sm:$0xff]
    %v451 = vld [vmem:[#allocation3 + $0x90] sm:$0xff]
    %v452 = vld [vmem:[#allocation3 + $0x98] sm:$0xff]
    %v453 = vld [vmem:[#allocation3 + $0xa0] sm:$0xff]
    %v454 = vld [vmem:[#allocation3 + $0xa8] sm:$0xff]
    %v455 = vld [vmem:[#allocation3 + $0xb0] sm:$0xff]
    %v456 = vld [vmem:[#allocation3 + $0xb8] sm:$0xff]
    %v457 = vld [vmem:[#allocation3 + $0xc0] sm:$0xff]
    %v458 = vld [vmem:[#allocation3 + $0xc8] sm:$0xff]
    %v459 = vld [vmem:[#allocation3 + $0xd0] sm:$0xff]
    %v460 = vld [vmem:[#allocation3 + $0xd8] sm:$0xff]
    %v461 = vld [vmem:[#allocation3 + $0xe0] sm:$0xff]
    %v462 = vld [vmem:[#allocation3 + $0xe8] sm:$0xff]
    %v463 = vld [vmem:[#allocation3 + $0xf0] sm:$0xff]
    %v464 = vld [vmem:[#allocation3 + $0xf8] sm:$0xff]
    %v465 = vld [vmem:[#allocation3 + $0x100] sm:$0xff]
    %v466 = vld [vmem:[#allocation3 + $0x108] sm:$0xff]
    %v467 = vld [vmem:[#allocation3 + $0x110] sm:$0xff]
    %v468 = vld [vmem:[#allocation3 + $0x118] sm:$0xff]
    %v469 = vld [vmem:[#allocation3 + $0x120] sm:$0xff]
    %v470 = vld [vmem:[#allocation3 + $0x128] sm:$0xff]
    %v471 = vld [vmem:[#allocation3 + $0x130] sm:$0xff]
    %v472 = vld [vmem:[#allocation3 + $0x138] sm:$0xff]
    %v473 = vld [vmem:[#allocation3 + $0x140] sm:$0xff]
    %v474 = vld [vmem:[#allocation3 + $0x148] sm:$0xff]
    %v475 = vld [vmem:[#allocation3 + $0x150] sm:$0xff]
    %v476 = vld [vmem:[#allocation3 + $0x158] sm:$0xff]
    %v477 = vld [vmem:[#allocation3 + $0x160] sm:$0xff]
    %v478 = vld [vmem:[#allocation3 + $0x168] sm:$0xff]
    %v479 = vld [vmem:[#allocation3 + $0x170] sm:$0xff]
    %v480 = vld [vmem:[#allocation3 + $0x178] sm:$0xff]
    %v481 = vld [vmem:[%s7] sm:$0x7]
    %v482 = vld [vmem:[#allocation2] sm:$0xff]
    %v483 = vld [vmem:[#allocation2 + $0x8] sm:$0xff]
    %v484 = vld [vmem:[#allocation2 + $0x10] sm:$0xff]
    %v486 = vlaneseq
    %v487 = vshrl.u32 %v486, 7
    %v488 = vsub.s32 0, %v487
    %v489 = vrot.slane %v481, %v488
    %v490 = vlaneseq
    %v491 = vshrl.u32 %v490, 7
    %v492 = vsub.s32 1, %v491
    %v493 = vrot.slane %v481, %v492
    %v494 = vlaneseq
    %v495 = vshrl.u32 %v494, 7
    %v496 = vsub.s32 2, %v495
    %v497 = vrot.slane %v481, %v496
    %501 = vmatprep.subr.mxu0 %v434
    %502 = vmatpush1.msra.mxu0 %v433
    %503 = vmatprep.subr.mxu0 %v437
    %504 = vmatpush1.msra.mxu0 %v436
    %505 = vmatprep.subr.mxu0 %v440
    %506 = vmatpush1.msra.mxu0 %v439
    %507 = vmatprep.subr.mxu0 %v443
    %508 = vmatpush1.msra.mxu0 %v442
    %509 = vmatprep.subr.mxu0 %v446
    %510 = vmatpush1.msra.mxu0 %v445
    %511 = vmatprep.subr.mxu0 %v449
    %512 = vmatpush1.msra.mxu0 %v448
    %513 = vmatprep.subr.mxu0 %v452
    %514 = vmatpush1.msra.mxu0 %v451
    %515 = vmatprep.subr.mxu0 %v455
    %516 = vmatpush1.msra.mxu0 %v454
    %517 = vmatprep.subr.mxu0 %v458
    %518 = vmatpush1.msra.mxu0 %v457
    %519 = vmatprep.subr.mxu0 %v461
    %520 = vmatpush1.msra.mxu0 %v460
    %521 = vmatprep.subr.mxu0 %v464
    %522 = vmatpush1.msra.mxu0 %v463
    %523 = vmatprep.subr.mxu0 %v467
    %524 = vmatpush1.msra.mxu0 %v466
    %525 = vmatprep.subr.mxu0 %v470
    %526 = vmatpush1.msra.mxu0 %v469
    %527 = vmatprep.subr.mxu0 %v473
    %528 = vmatpush1.msra.mxu0 %v472
    %529 = vmatprep.subr.mxu0 %v476
    %530 = vmatpush1.msra.mxu0 %v475
    %531 = vmatprep.subr.mxu0 %v479
    %532 = vmatpush1.msra.mxu0 %v478
    %533 = vmatprep.subr.mxu0 0.0
    %534 = vmatpush1.msra.mxu0 0.0
    %535 = vmatprep.subr.mxu0 0.0
    %536 = vmatpush1.msra.mxu0 0.0
    %537 = vmatprep.subr.mxu0 0.0
    %538 = vmatpush1.msra.mxu0 0.0
    %539 = vmatprep.subr.mxu0 0.0
    %540 = vmatpush1.msra.mxu0 0.0
    %541 = vmatprep.subr.mxu0 0.0
    %542 = vmatpush1.msra.mxu0 0.0
    %543 = vmatprep.subr.mxu0 0.0
    %544 = vmatpush1.msra.mxu0 0.0
    %545 = vmatprep.subr.mxu0 0.0
    %546 = vmatpush1.msra.mxu0 0.0
    %547 = vmatprep.subr.mxu0 0.0
    %548 = vmatpush1.msra.mxu0 0.0
    %549 = vmatprep.subr.mxu0 0.0
    %550 = vmatpush1.msra.mxu0 0.0
    %551 = vmatprep.subr.mxu0 0.0
    %552 = vmatpush1.msra.mxu0 0.0
    %553 = vmatprep.subr.mxu0 0.0
    %554 = vmatpush1.msra.mxu0 0.0
    %555 = vmatprep.subr.mxu0 0.0
    %556 = vmatpush1.msra.mxu0 0.0
    %557 = vmatprep.subr.mxu0 0.0
    %558 = vmatpush1.msra.mxu0 0.0
    %559 = vmatprep.subr.mxu0 0.0
    %560 = vmatpush1.msra.mxu0 0.0
    %561 = vmatprep.subr.mxu0 0.0
    %562 = vmatpush1.msra.mxu0 0.0
    %563 = vmatprep.subr.mxu0 0.0
    %564 = vmatpush1.msra.mxu0 0.0
    %565 = vmatprep.mubr.f32.mxu0 0.0
    %566 = vmatmul.mubr.f32.gmra.mrb[0].mxu0 %v126
    %v567 = vpop.f32.mrb[0].mxu0
    %v568 = vadd.f32 %v489, %v567
    %v569 = vpop.f32.mrb[0].mxu0
    %v570 = vadd.f32 %v493, %v569
    %571 = vdwg.mxu0
    %572 = vmatprep.subr.mxu0 0.0
    %573 = vmatpush1.msra.mxu0 %v435
    %574 = vmatprep.subr.mxu0 0.0
    %575 = vmatpush1.msra.mxu0 %v438
    %576 = vmatprep.subr.mxu0 0.0
    %577 = vmatpush1.msra.mxu0 %v441
    %578 = vmatprep.subr.mxu0 0.0
    %579 = vmatpush1.msra.mxu0 %v444
    %580 = vmatprep.subr.mxu0 0.0
    %581 = vmatpush1.msra.mxu0 %v447
    %582 = vmatprep.subr.mxu0 0.0
    %583 = vmatpush1.msra.mxu0 %v450
    %584 = vmatprep.subr.mxu0 0.0
    %585 = vmatpush1.msra.mxu0 %v453
    %586 = vmatprep.subr.mxu0 0.0
    %587 = vmatpush1.msra.mxu0 %v456
    %588 = vmatprep.subr.mxu0 0.0
    %589 = vmatpush1.msra.mxu0 %v459
    %590 = vmatprep.subr.mxu0 0.0
    %591 = vmatpush1.msra.mxu0 %v462
    %592 = vmatprep.subr.mxu0 0.0
    %593 = vmatpush1.msra.mxu0 %v465
    %594 = vmatprep.subr.mxu0 0.0
    %595 = vmatpush1.msra.mxu0 %v468
    %596 = vmatprep.subr.mxu0 0.0
    %597 = vmatpush1.msra.mxu0 %v471
    %598 = vmatprep.subr.mxu0 0.0
    %599 = vmatpush1.msra.mxu0 %v474
    %600 = vmatprep.subr.mxu0 0.0
    %601 = vmatpush1.msra.mxu0 %v477
    %602 = vmatprep.subr.mxu0 0.0
    %603 = vmatpush1.msra.mxu0 %v480
    %604 = vmatprep.subr.mxu0 0.0
    %605 = vmatpush1.msra.mxu0 0.0
    %606 = vmatprep.subr.mxu0 0.0
    %607 = vmatpush1.msra.mxu0 0.0
    %608 = vmatprep.subr.mxu0 0.0
    %609 = vmatpush1.msra.mxu0 0.0
    %610 = vmatprep.subr.mxu0 0.0
    %611 = vmatpush1.msra.mxu0 0.0
    %612 = vmatprep.subr.mxu0 0.0
    %613 = vmatpush1.msra.mxu0 0.0
    %614 = vmatprep.subr.mxu0 0.0
    %615 = vmatpush1.msra.mxu0 0.0
    %616 = vmatprep.subr.mxu0 0.0
    %617 = vmatpush1.msra.mxu0 0.0
    %618 = vmatprep.subr.mxu0 0.0
    %619 = vmatpush1.msra.mxu0 0.0
    %620 = vmatprep.subr.mxu0 0.0
    %621 = vmatpush1.msra.mxu0 0.0
    %622 = vmatprep.subr.mxu0 0.0
    %623 = vmatpush1.msra.mxu0 0.0
    %624 = vmatprep.subr.mxu0 0.0
    %625 = vmatpush1.msra.mxu0 0.0
    %626 = vmatprep.subr.mxu0 0.0
    %627 = vmatpush1.msra.mxu0 0.0
    %628 = vmatprep.subr.mxu0 0.0
    %629 = vmatpush1.msra.mxu0 0.0
    %630 = vmatprep.subr.mxu0 0.0
    %631 = vmatpush1.msra.mxu0 0.0
    %632 = vmatprep.subr.mxu0 0.0
    %633 = vmatpush1.msra.mxu0 0.0
    %634 = vmatprep.subr.mxu0 0.0
    %635 = vmatpush1.msra.mxu0 0.0
    %636 = vmatprep.mubr.f32.mxu0 0.0
    %637 = vmatmul.mubr.f32.gmra.mrb[0].mxu0 %v126
    %v638 = vpop.f32.mrb[0].mxu0
    %v639 = vadd.f32 %v497, %v638
    %v640 = vpop.f32.mrb[0].mxu0
    %641 = vdwg.mxu0
    %v642 = vadd.f32 %v482, %v568
    %v643 = vxor.u32 %v642, 2147483648
    %v644 = vmul.f32 %v643, 1.442695
    %v645 = vpow.pop %v644
    %v646 = vadd.f32 %v645, 1.0
    %v647 = vrcp.pop %v646
    %v648 = vmul.f32 1.0, %v647
    %v649 = vadd.f32 %v483, %v570
    %v650 = vxor.u32 %v649, 2147483648
    %v651 = vmul.f32 %v650, 1.442695
    %v652 = vpow.pop %v651
    %v653 = vadd.f32 %v652, 1.0
    %v654 = vrcp.pop %v653
    %v655 = vmul.f32 1.0, %v654
    %v656 = vmul.f32 %v648, %v639
    %v657 = vadd.f32 %v484, %v656
    %v658 = vtanh.pop %v657
    %v659 = vsub.f32 1.0, %v655
    %v660 = vmul.f32 %v659, %v658
    %v661 = vmul.f32 %v655, %v126
    %v662 = vadd.f32 %v660, %v661
    %663 = vst [vmem:[%s8] sm:$0xff] %v662
    %s664 = scalar_lea.vmem [#allocation2], 24
    %v665 = vld [vmem:[%s664] sm:$0xff]
    %v666 = vld [vmem:[%s664 + $0x8] sm:$0xff]
    %v667 = vld [vmem:[%s664 + $0x10] sm:$0xff]
    %668 = vmatprep.subr.mxu0 %v434
    %669 = vmatpush1.msra.mxu0 %v433
    %670 = vmatprep.subr.mxu0 %v437
    %671 = vmatpush1.msra.mxu0 %v436
    %672 = vmatprep.subr.mxu0 %v440
    %673 = vmatpush1.msra.mxu0 %v439
    %674 = vmatprep.subr.mxu0 %v443
    %675 = vmatpush1.msra.mxu0 %v442
    %676 = vmatprep.subr.mxu0 %v446
    %677 = vmatpush1.msra.mxu0 %v445
    %678 = vmatprep.subr.mxu0 %v449
    %679 = vmatpush1.msra.mxu0 %v448
    %680 = vmatprep.subr.mxu0 %v452
    %681 = vmatpush1.msra.mxu0 %v451
    %682 = vmatprep.subr.mxu0 %v455
    %683 = vmatpush1.msra.mxu0 %v454
    %684 = vmatprep.subr.mxu0 %v458
    %685 = vmatpush1.msra.mxu0 %v457
    %686 = vmatprep.subr.mxu0 %v461
    %687 = vmatpush1.msra.mxu0 %v460
    %688 = vmatprep.subr.mxu0 %v464
    %689 = vmatpush1.msra.mxu0 %v463
    %690 = vmatprep.subr.mxu0 %v467
    %691 = vmatpush1.msra.mxu0 %v466
    %692 = vmatprep.subr.mxu0 %v470
    %693 = vmatpush1.msra.mxu0 %v469
    %694 = vmatprep.subr.mxu0 %v473
    %695 = vmatpush1.msra.mxu0 %v472
    %696 = vmatprep.subr.mxu0 %v476
    %697 = vmatpush1.msra.mxu0 %v475
    %698 = vmatprep.subr.mxu0 %v479
    %699 = vmatpush1.msra.mxu0 %v478
    %700 = vmatprep.subr.mxu0 0.0
    %701 = vmatpush1.msra.mxu0 0.0
    %702 = vmatprep.subr.mxu0 0.0
    %703 = vmatpush1.msra.mxu0 0.0
    %704 = vmatprep.subr.mxu0 0.0
    %705 = vmatpush1.msra.mxu0 0.0
    %706 = vmatprep.subr.mxu0 0.0
    %707 = vmatpush1.msra.mxu0 0.0
    %708 = vmatprep.subr.mxu0 0.0
    %709 = vmatpush1.msra.mxu0 0.0
    %710 = vmatprep.subr.mxu0 0.0
    %711 = vmatpush1.msra.mxu0 0.0
    %712 = vmatprep.subr.mxu0 0.0
    %713 = vmatpush1.msra.mxu0 0.0
    %714 = vmatprep.subr.mxu0 0.0
    %715 = vmatpush1.msra.mxu0 0.0
    %716 = vmatprep.subr.mxu0 0.0
    %717 = vmatpush1.msra.mxu0 0.0
    %718 = vmatprep.subr.mxu0 0.0
    %719 = vmatpush1.msra.mxu0 0.0
    %720 = vmatprep.subr.mxu0 0.0
    %721 = vmatpush1.msra.mxu0 0.0
    %722 = vmatprep.subr.mxu0 0.0
    %723 = vmatpush1.msra.mxu0 0.0
    %724 = vmatprep.subr.mxu0 0.0
    %725 = vmatpush1.msra.mxu0 0.0
    %726 = vmatprep.subr.mxu0 0.0
    %727 = vmatpush1.msra.mxu0 0.0
    %728 = vmatprep.subr.mxu0 0.0
    %729 = vmatpush1.msra.mxu0 0.0
    %730 = vmatprep.subr.mxu0 0.0
    %731 = vmatpush1.msra.mxu0 0.0
    %732 = vmatprep.mubr.f32.mxu0 0.0
    %733 = vmatmul.mubr.f32.gmra.mrb[0].mxu0 %v662
    %v734 = vpop.f32.mrb[0].mxu0
    %v735 = vadd.f32 %v489, %v734
    %v736 = vpop.f32.mrb[0].mxu0
    %v737 = vadd.f32 %v493, %v736
    %738 = vdwg.mxu0
    %739 = vmatprep.subr.mxu0 0.0
    %740 = vmatpush1.msra.mxu0 %v435
    %741 = vmatprep.subr.mxu0 0.0
    %742 = vmatpush1.msra.mxu0 %v438
    %743 = vmatprep.subr.mxu0 0.0
    %744 = vmatpush1.msra.mxu0 %v441
    %745 = vmatprep.subr.mxu0 0.0
    %746 = vmatpush1.msra.mxu0 %v444
    %747 = vmatprep.subr.mxu0 0.0
    %748 = vmatpush1.msra.mxu0 %v447
    %749 = vmatprep.subr.mxu0 0.0
    %750 = vmatpush1.msra.mxu0 %v450
    %751 = vmatprep.subr.mxu0 0.0
    %752 = vmatpush1.msra.mxu0 %v453
    %753 = vmatprep.subr.mxu0 0.0
    %754 = vmatpush1.msra.mxu0 %v456
    %755 = vmatprep.subr.mxu0 0.0
    %756 = vmatpush1.msra.mxu0 %v459
    %757 = vmatprep.subr.mxu0 0.0
    %758 = vmatpush1.msra.mxu0 %v462
    %759 = vmatprep.subr.mxu0 0.0
    %760 = vmatpush1.msra.mxu0 %v465
    %761 = vmatprep.subr.mxu0 0.0
    %762 = vmatpush1.msra.mxu0 %v468
    %763 = vmatprep.subr.mxu0 0.0
    %764 = vmatpush1.msra.mxu0 %v471
    %765 = vmatprep.subr.mxu0 0.0
    %766 = vmatpush1.msra.mxu0 %v474
    %767 = vmatprep.subr.mxu0 0.0
    %768 = vmatpush1.msra.mxu0 %v477
    %769 = vmatprep.subr.mxu0 0.0
    %770 = vmatpush1.msra.mxu0 %v480
    %771 = vmatprep.subr.mxu0 0.0
    %772 = vmatpush1.msra.mxu0 0.0
    %773 = vmatprep.subr.mxu0 0.0
    %774 = vmatpush1.msra.mxu0 0.0
    %775 = vmatprep.subr.mxu0 0.0
    %776 = vmatpush1.msra.mxu0 0.0
    %777 = vmatprep.subr.mxu0 0.0
    %778 = vmatpush1.msra.mxu0 0.0
    %779 = vmatprep.subr.mxu0 0.0
    %780 = vmatpush1.msra.mxu0 0.0
    %781 = vmatprep.subr.mxu0 0.0
    %782 = vmatpush1.msra.mxu0 0.0
    %783 = vmatprep.subr.mxu0 0.0
    %784 = vmatpush1.msra.mxu0 0.0
    %785 = vmatprep.subr.mxu0 0.0
    %786 = vmatpush1.msra.mxu0 0.0
    %787 = vmatprep.subr.mxu0 0.0
    %788 = vmatpush1.msra.mxu0 0.0
    %789 = vmatprep.subr.mxu0 0.0
    %790 = vmatpush1.msra.mxu0 0.0
    %791 = vmatprep.subr.mxu0 0.0
    %792 = vmatpush1.msra.mxu0 0.0
    %793 = vmatprep.subr.mxu0 0.0
    %794 = vmatpush1.msra.mxu0 0.0
    %795 = vmatprep.subr.mxu0 0.0
    %796 = vmatpush1.msra.mxu0 0.0
    %797 = vmatprep.subr.mxu0 0.0
    %798 = vmatpush1.msra.mxu0 0.0
    %799 = vmatprep.subr.mxu0 0.0
    %800 = vmatpush1.msra.mxu0 0.0
    %801 = vmatprep.subr.mxu0 0.0
    %802 = vmatpush1.msra.mxu0 0.0
    %803 = vmatprep.mubr.f32.mxu0 0.0
    %804 = vmatmul.mubr.f32.gmra.mrb[0].mxu0 %v662
    %v805 = vpop.f32.mrb[0].mxu0
    %v806 = vadd.f32 %v497, %v805
    %v807 = vpop.f32.mrb[0].mxu0
    %808 = vdwg.mxu0
    %v809 = vadd.f32 %v665, %v735
    %v810 = vxor.u32 %v809, 2147483648
    %v811 = vmul.f32 %v810, 1.442695
    %v812 = vpow.pop %v811
    %v813 = vadd.f32 %v812, 1.0
    %v814 = vrcp.pop %v813
    %v815 = vmul.f32 1.0, %v814
    %v816 = vadd.f32 %v666, %v737
    %v817 = vxor.u32 %v816, 2147483648
    %v818 = vmul.f32 %v817, 1.442695
    %v819 = vpow.pop %v818
    %v820 = vadd.f32 %v819, 1.0
    %v821 = vrcp.pop %v820
    %v822 = vmul.f32 1.0, %v821
    %v823 = vmul.f32 %v815, %v806
    %v824 = vadd.f32 %v667, %v823
    %v825 = vtanh.pop %v824
    %v826 = vsub.f32 1.0, %v822
    %v827 = vmul.f32 %v826, %v825
    %v828 = vmul.f32 %v822, %v662
    %v829 = vadd.f32 %v827, %v828
    %s830 = scalar_lea.vmem %s8, 8
    %831 = vst [vmem:[%s830] sm:$0xff] %v829
    %s832 = scalar_lea.vmem [#allocation2], 48
    %v833 = vld [vmem:[%s832] sm:$0xff]
    %v834 = vld [vmem:[%s832 + $0x8] sm:$0xff]
    %v835 = vld [vmem:[%s832 + $0x10] sm:$0xff]
    %836 = vmatprep.subr.mxu0 %v434
    %837 = vmatpush1.msra.mxu0 %v433
    %838 = vmatprep.subr.mxu0 %v437
    %839 = vmatpush1.msra.mxu0 %v436
    %840 = vmatprep.subr.mxu0 %v440
    %841 = vmatpush1.msra.mxu0 %v439
    %842 = vmatprep.subr.mxu0 %v443
    %843 = vmatpush1.msra.mxu0 %v442
    %844 = vmatprep.subr.mxu0 %v446
    %845 = vmatpush1.msra.mxu0 %v445
    %846 = vmatprep.subr.mxu0 %v449
    %847 = vmatpush1.msra.mxu0 %v448
    %848 = vmatprep.subr.mxu0 %v452
    %849 = vmatpush1.msra.mxu0 %v451
    %850 = vmatprep.subr.mxu0 %v455
    %851 = vmatpush1.msra.mxu0 %v454
    %852 = vmatprep.subr.mxu0 %v458
    %853 = vmatpush1.msra.mxu0 %v457
    %854 = vmatprep.subr.mxu0 %v461
    %855 = vmatpush1.msra.mxu0 %v460
    %856 = vmatprep.subr.mxu0 %v464
    %857 = vmatpush1.msra.mxu0 %v463
    %858 = vmatprep.subr.mxu0 %v467
    %859 = vmatpush1.msra.mxu0 %v466
    %860 = vmatprep.subr.mxu0 %v470
    %861 = vmatpush1.msra.mxu0 %v469
    %862 = vmatprep.subr.mxu0 %v473
    %863 = vmatpush1.msra.mxu0 %v472
    %864 = vmatprep.subr.mxu0 %v476
    %865 = vmatpush1.msra.mxu0 %v475
    %866 = vmatprep.subr.mxu0 %v479
    %867 = vmatpush1.msra.mxu0 %v478
    %868 = vmatprep.subr.mxu0 0.0
    %869 = vmatpush1.msra.mxu0 0.0
    %870 = vmatprep.subr.mxu0 0.0
    %871 = vmatpush1.msra.mxu0 0.0
    %872 = vmatprep.subr.mxu0 0.0
    %873 = vmatpush1.msra.mxu0 0.0
    %874 = vmatprep.subr.mxu0 0.0
    %875 = vmatpush1.msra.mxu0 0.0
    %876 = vmatprep.subr.mxu0 0.0
    %877 = vmatpush1.msra.mxu0 0.0
    %878 = vmatprep.subr.mxu0 0.0
    %879 = vmatpush1.msra.mxu0 0.0
    %880 = vmatprep.subr.mxu0 0.0
    %881 = vmatpush1.msra.mxu0 0.0
    %882 = vmatprep.subr.mxu0 0.0
    %883 = vmatpush1.msra.mxu0 0.0
    %884 = vmatprep.subr.mxu0 0.0
    %885 = vmatpush1.msra.mxu0 0.0
    %886 = vmatprep.subr.mxu0 0.0
    %887 = vmatpush1.msra.mxu0 0.0
    %888 = vmatprep.subr.mxu0 0.0
    %889 = vmatpush1.msra.mxu0 0.0
    %890 = vmatprep.subr.mxu0 0.0
    %891 = vmatpush1.msra.mxu0 0.0
    %892 = vmatprep.subr.mxu0 0.0
    %893 = vmatpush1.msra.mxu0 0.0
    %894 = vmatprep.subr.mxu0 0.0
    %895 = vmatpush1.msra.mxu0 0.0
    %896 = vmatprep.subr.mxu0 0.0
    %897 = vmatpush1.msra.mxu0 0.0
    %898 = vmatprep.subr.mxu0 0.0
    %899 = vmatpush1.msra.mxu0 0.0
    %900 = vmatprep.mubr.f32.mxu0 0.0
    %901 = vmatmul.mubr.f32.gmra.mrb[0].mxu0 %v829
    %v902 = vpop.f32.mrb[0].mxu0
    %v903 = vadd.f32 %v489, %v902
    %v904 = vpop.f32.mrb[0].mxu0
    %v905 = vadd.f32 %v493, %v904
    %906 = vdwg.mxu0
    %907 = vmatprep.subr.mxu0 0.0
    %908 = vmatpush1.msra.mxu0 %v435
    %909 = vmatprep.subr.mxu0 0.0
    %910 = vmatpush1.msra.mxu0 %v438
    %911 = vmatprep.subr.mxu0 0.0
    %912 = vmatpush1.msra.mxu0 %v441
    %913 = vmatprep.subr.mxu0 0.0
    %914 = vmatpush1.msra.mxu0 %v444
    %915 = vmatprep.subr.mxu0 0.0
    %916 = vmatpush1.msra.mxu0 %v447
    %917 = vmatprep.subr.mxu0 0.0
    %918 = vmatpush1.msra.mxu0 %v450
    %919 = vmatprep.subr.mxu0 0.0
    %920 = vmatpush1.msra.mxu0 %v453
    %921 = vmatprep.subr.mxu0 0.0
    %922 = vmatpush1.msra.mxu0 %v456
    %923 = vmatprep.subr.mxu0 0.0
    %924 = vmatpush1.msra.mxu0 %v459
    %925 = vmatprep.subr.mxu0 0.0
    %926 = vmatpush1.msra.mxu0 %v462
    %927 = vmatprep.subr.mxu0 0.0
    %928 = vmatpush1.msra.mxu0 %v465
    %929 = vmatprep.subr.mxu0 0.0
    %930 = vmatpush1.msra.mxu0 %v468
    %931 = vmatprep.subr.mxu0 0.0
    %932 = vmatpush1.msra.mxu0 %v471
    %933 = vmatprep.subr.mxu0 0.0
    %934 = vmatpush1.msra.mxu0 %v474
    %935 = vmatprep.subr.mxu0 0.0
    %936 = vmatpush1.msra.mxu0 %v477
    %937 = vmatprep.subr.mxu0 0.0
    %938 = vmatpush1.msra.mxu0 %v480
    %939 = vmatprep.subr.mxu0 0.0
    %940 = vmatpush1.msra.mxu0 0.0
    %941 = vmatprep.subr.mxu0 0.0
    %942 = vmatpush1.msra.mxu0 0.0
    %943 = vmatprep.subr.mxu0 0.0
    %944 = vmatpush1.msra.mxu0 0.0
    %945 = vmatprep.subr.mxu0 0.0
    %946 = vmatpush1.msra.mxu0 0.0
    %947 = vmatprep.subr.mxu0 0.0
    %948 = vmatpush1.msra.mxu0 0.0
    %949 = vmatprep.subr.mxu0 0.0
    %950 = vmatpush1.msra.mxu0 0.0
    %951 = vmatprep.subr.mxu0 0.0
    %952 = vmatpush1.msra.mxu0 0.0
    %953 = vmatprep.subr.mxu0 0.0
    %954 = vmatpush1.msra.mxu0 0.0
    %955 = vmatprep.subr.mxu0 0.0
    %956 = vmatpush1.msra.mxu0 0.0
    %957 = vmatprep.subr.mxu0 0.0
    %958 = vmatpush1.msra.mxu0 0.0
    %959 = vmatprep.subr.mxu0 0.0
    %960 = vmatpush1.msra.mxu0 0.0
    %961 = vmatprep.subr.mxu0 0.0
    %962 = vmatpush1.msra.mxu0 0.0
    %963 = vmatprep.subr.mxu0 0.0
    %964 = vmatpush1.msra.mxu0 0.0
    %965 = vmatprep.subr.mxu0 0.0
    %966 = vmatpush1.msra.mxu0 0.0
    %967 = vmatprep.subr.mxu0 0.0
    %968 = vmatpush1.msra.mxu0 0.0
    %969 = vmatprep.subr.mxu0 0.0
    %970 = vmatpush1.msra.mxu0 0.0
    %971 = vmatprep.mubr.f32.mxu0 0.0
    %972 = vmatmul.mubr.f32.gmra.mrb[0].mxu0 %v829
    %v973 = vpop.f32.mrb[0].mxu0
    %v974 = vadd.f32 %v497, %v973
    %v975 = vpop.f32.mrb[0].mxu0
    %976 = vdwg.mxu0
    %v977 = vadd.f32 %v833, %v903
    %v978 = vxor.u32 %v977, 2147483648
    %v979 = vmul.f32 %v978, 1.442695
    %v980 = vpow.pop %v979
    %v981 = vadd.f32 %v980, 1.0
    %v982 = vrcp.pop %v981
    %v983 = vmul.f32 1.0, %v982
    %v984 = vadd.f32 %v834, %v905
    %v985 = vxor.u32 %v984, 2147483648
    %v986 = vmul.f32 %v985, 1.442695
    %v987 = vpow.pop %v986
    %v988 = vadd.f32 %v987, 1.0
    %v989 = vrcp.pop %v988
    %v990 = vmul.f32 1.0, %v989
    %v991 = vmul.f32 %v983, %v974
    %v992 = vadd.f32 %v835, %v991
    %v993 = vtanh.pop %v992
    %v994 = vsub.f32 1.0, %v990
    %v995 = vmul.f32 %v994, %v993
    %v996 = vmul.f32 %v990, %v829
    %v997 = vadd.f32 %v995, %v996
    %s998 = scalar_lea.vmem %s8, 16
    %999 = vst [vmem:[%s998] sm:$0xff] %v997
    %s1000 = scalar_lea.vmem [#allocation2], 72
    %v1001 = vld [vmem:[%s1000] sm:$0xff]
    %v1002 = vld [vmem:[%s1000 + $0x8] sm:$0xff]
    %v1003 = vld [vmem:[%s1000 + $0x10] sm:$0xff]
    %1004 = vmatprep.subr.mxu0 %v434
    %1005 = vmatpush1.msra.mxu0 %v433
    %1006 = vmatprep.subr.mxu0 %v437
    %1007 = vmatpush1.msra.mxu0 %v436
    %1008 = vmatprep.subr.mxu0 %v440
    %1009 = vmatpush1.msra.mxu0 %v439
    %1010 = vmatprep.subr.mxu0 %v443
    %1011 = vmatpush1.msra.mxu0 %v442
    %1012 = vmatprep.subr.mxu0 %v446
    %1013 = vmatpush1.msra.mxu0 %v445
    %1014 = vmatprep.subr.mxu0 %v449
    %1015 = vmatpush1.msra.mxu0 %v448
    %1016 = vmatprep.subr.mxu0 %v452
    %1017 = vmatpush1.msra.mxu0 %v451
    %1018 = vmatprep.subr.mxu0 %v455
    %1019 = vmatpush1.msra.mxu0 %v454
    %1020 = vmatprep.subr.mxu0 %v458
    %1021 = vmatpush1.msra.mxu0 %v457
    %1022 = vmatprep.subr.mxu0 %v461
    %1023 = vmatpush1.msra.mxu0 %v460
    %1024 = vmatprep.subr.mxu0 %v464
    %1025 = vmatpush1.msra.mxu0 %v463
    %1026 = vmatprep.subr.mxu0 %v467
    %1027 = vmatpush1.msra.mxu0 %v466
    %1028 = vmatprep.subr.mxu0 %v470
    %1029 = vmatpush1.msra.mxu0 %v469
    %1030 = vmatprep.subr.mxu0 %v473
    %1031 = vmatpush1.msra.mxu0 %v472
    %1032 = vmatprep.subr.mxu0 %v476
    %1033 = vmatpush1.msra.mxu0 %v475
    %1034 = vmatprep.subr.mxu0 %v479
    %1035 = vmatpush1.msra.mxu0 %v478
    %1036 = vmatprep.subr.mxu0 0.0
    %1037 = vmatpush1.msra.mxu0 0.0
    %1038 = vmatprep.subr.mxu0 0.0
    %1039 = vmatpush1.msra.mxu0 0.0
    %1040 = vmatprep.subr.mxu0 0.0
    %1041 = vmatpush1.msra.mxu0 0.0
    %1042 = vmatprep.subr.mxu0 0.0
    %1043 = vmatpush1.msra.mxu0 0.0
    %1044 = vmatprep.subr.mxu0 0.0
    %1045 = vmatpush1.msra.mxu0 0.0
    %1046 = vmatprep.subr.mxu0 0.0
    %1047 = vmatpush1.msra.mxu0 0.0
    %1048 = vmatprep.subr.mxu0 0.0
    %1049 = vmatpush1.msra.mxu0 0.0
    %1050 = vmatprep.subr.mxu0 0.0
    %1051 = vmatpush1.msra.mxu0 0.0
    %1052 = vmatprep.subr.mxu0 0.0
    %1053 = vmatpush1.msra.mxu0 0.0
    %1054 = vmatprep.subr.mxu0 0.0
    %1055 = vmatpush1.msra.mxu0 0.0
    %1056 = vmatprep.subr.mxu0 0.0
    %1057 = vmatpush1.msra.mxu0 0.0
    %1058 = vmatprep.subr.mxu0 0.0
    %1059 = vmatpush1.msra.mxu0 0.0
    %1060 = vmatprep.subr.mxu0 0.0
    %1061 = vmatpush1.msra.mxu0 0.0
    %1062 = vmatprep.subr.mxu0 0.0
    %1063 = vmatpush1.msra.mxu0 0.0
    %1064 = vmatprep.subr.mxu0 0.0
    %1065 = vmatpush1.msra.mxu0 0.0
    %1066 = vmatprep.subr.mxu0 0.0
    %1067 = vmatpush1.msra.mxu0 0.0
    %1068 = vmatprep.mubr.f32.mxu0 0.0
    %1069 = vmatmul.mubr.f32.gmra.mrb[0].mxu0 %v997
    %v1070 = vpop.f32.mrb[0].mxu0
    %v1071 = vadd.f32 %v489, %v1070
    %v1072 = vpop.f32.mrb[0].mxu0
    %v1073 = vadd.f32 %v493, %v1072
    %1074 = vdwg.mxu0
    %1075 = vmatprep.subr.mxu0 0.0
    %1076 = vmatpush1.msra.mxu0 %v435
    %1077 = vmatprep.subr.mxu0 0.0
    %1078 = vmatpush1.msra.mxu0 %v438
    %1079 = vmatprep.subr.mxu0 0.0
    %1080 = vmatpush1.msra.mxu0 %v441
    %1081 = vmatprep.subr.mxu0 0.0
    %1082 = vmatpush1.msra.mxu0 %v444
    %1083 = vmatprep.subr.mxu0 0.0
    %1084 = vmatpush1.msra.mxu0 %v447
    %1085 = vmatprep.subr.mxu0 0.0
    %1086 = vmatpush1.msra.mxu0 %v450
    %1087 = vmatprep.subr.mxu0 0.0
    %1088 = vmatpush1.msra.mxu0 %v453
    %1089 = vmatprep.subr.mxu0 0.0
    %1090 = vmatpush1.msra.mxu0 %v456
    %1091 = vmatprep.subr.mxu0 0.0
    %1092 = vmatpush1.msra.mxu0 %v459
    %1093 = vmatprep.subr.mxu0 0.0
    %1094 = vmatpush1.msra.mxu0 %v462
    %1095 = vmatprep.subr.mxu0 0.0
    %1096 = vmatpush1.msra.mxu0 %v465
    %1097 = vmatprep.subr.mxu0 0.0
    %1098 = vmatpush1.msra.mxu0 %v468
    %1099 = vmatprep.subr.mxu0 0.0
    %1100 = vmatpush1.msra.mxu0 %v471
    %1101 = vmatprep.subr.mxu0 0.0
    %1102 = vmatpush1.msra.mxu0 %v474
    %1103 = vmatprep.subr.mxu0 0.0
    %1104 = vmatpush1.msra.mxu0 %v477
    %1105 = vmatprep.subr.mxu0 0.0
    %1106 = vmatpush1.msra.mxu0 %v480
    %1107 = vmatprep.subr.mxu0 0.0
    %1108 = vmatpush1.msra.mxu0 0.0
    %1109 = vmatprep.subr.mxu0 0.0
    %1110 = vmatpush1.msra.mxu0 0.0
    %1111 = vmatprep.subr.mxu0 0.0
    %1112 = vmatpush1.msra.mxu0 0.0
    %1113 = vmatprep.subr.mxu0 0.0
    %1114 = vmatpush1.msra.mxu0 0.0
    %1115 = vmatprep.subr.mxu0 0.0
    %1116 = vmatpush1.msra.mxu0 0.0
    %1117 = vmatprep.subr.mxu0 0.0
    %1118 = vmatpush1.msra.mxu0 0.0
    %1119 = vmatprep.subr.mxu0 0.0
    %1120 = vmatpush1.msra.mxu0 0.0
    %1121 = vmatprep.subr.mxu0 0.0
    %1122 = vmatpush1.msra.mxu0 0.0
    %1123 = vmatprep.subr.mxu0 0.0
    %1124 = vmatpush1.msra.mxu0 0.0
    %1125 = vmatprep.subr.mxu0 0.0
    %1126 = vmatpush1.msra.mxu0 0.0
    %1127 = vmatprep.subr.mxu0 0.0
    %1128 = vmatpush1.msra.mxu0 0.0
    %1129 = vmatprep.subr.mxu0 0.0
    %1130 = vmatpush1.msra.mxu0 0.0
    %1131 = vmatprep.subr.mxu0 0.0
    %1132 = vmatpush1.msra.mxu0 0.0
    %1133 = vmatprep.subr.mxu0 0.0
    %1134 = vmatpush1.msra.mxu0 0.0
    %1135 = vmatprep.subr.mxu0 0.0
    %1136 = vmatpush1.msra.mxu0 0.0
    %1137 = vmatprep.subr.mxu0 0.0
    %1138 = vmatpush1.msra.mxu0 0.0
    %1139 = vmatprep.mubr.f32.mxu0 0.0
    %1140 = vmatmul.mubr.f32.gmra.mrb[0].mxu0 %v997
    %v1141 = vpop.f32.mrb[0].mxu0
    %v1142 = vadd.f32 %v497, %v1141
    %v1143 = vpop.f32.mrb[0].mxu0
    %1144 = vdwg.mxu0
    %v1145 = vadd.f32 %v1001, %v1071
    %v1146 = vxor.u32 %v1145, 2147483648
    %v1147 = vmul.f32 %v1146, 1.442695
    %v1148 = vpow.pop %v1147
    %v1149 = vadd.f32 %v1148, 1.0
    %v1150 = vrcp.pop %v1149
    %v1151 = vmul.f32 1.0, %v1150
    %v1152 = vadd.f32 %v1002, %v1073
    %v1153 = vxor.u32 %v1152, 2147483648
    %v1154 = vmul.f32 %v1153, 1.442695
    %v1155 = vpow.pop %v1154
    %v1156 = vadd.f32 %v1155, 1.0
    %v1157 = vrcp.pop %v1156
    %v1158 = vmul.f32 1.0, %v1157
    %v1159 = vmul.f32 %v1151, %v1142
    %v1160 = vadd.f32 %v1003, %v1159
    %v1161 = vtanh.pop %v1160
    %v1162 = vsub.f32 1.0, %v1158
    %v1163 = vmul.f32 %v1162, %v1161
    %v1164 = vmul.f32 %v1158, %v997
    %v1165 = vadd.f32 %v1163, %v1164
    %s1166 = scalar_lea.vmem %s8, 24
    %1167 = vst [vmem:[%s1166] sm:$0xff] %v1165
    %s1168 = scalar_lea.vmem [#allocation2], 96
    %v1169 = vld [vmem:[%s1168] sm:$0xff]
    %v1170 = vld [vmem:[%s1168 + $0x8] sm:$0xff]
    %v1171 = vld [vmem:[%s1168 + $0x10] sm:$0xff]
    %1172 = vmatprep.subr.mxu0 %v434
    %1173 = vmatpush1.msra.mxu0 %v433
    %1174 = vmatprep.subr.mxu0 %v437
    %1175 = vmatpush1.msra.mxu0 %v436
    %1176 = vmatprep.subr.mxu0 %v440
    %1177 = vmatpush1.msra.mxu0 %v439
    %1178 = vmatprep.subr.mxu0 %v443
    %1179 = vmatpush1.msra.mxu0 %v442
    %1180 = vmatprep.subr.mxu0 %v446
    %1181 = vmatpush1.msra.mxu0 %v445
    %1182 = vmatprep.subr.mxu0 %v449
    %1183 = vmatpush1.msra.mxu0 %v448
    %1184 = vmatprep.subr.mxu0 %v452
    %1185 = vmatpush1.msra.mxu0 %v451
    %1186 = vmatprep.subr.mxu0 %v455
    %1187 = vmatpush1.msra.mxu0 %v454
    %1188 = vmatprep.subr.mxu0 %v458
    %1189 = vmatpush1.msra.mxu0 %v457
    %1190 = vmatprep.subr.mxu0 %v461
    %1191 = vmatpush1.msra.mxu0 %v460
    %1192 = vmatprep.subr.mxu0 %v464
    %1193 = vmatpush1.msra.mxu0 %v463
    %1194 = vmatprep.subr.mxu0 %v467
    %1195 = vmatpush1.msra.mxu0 %v466
    %1196 = vmatprep.subr.mxu0 %v470
    %1197 = vmatpush1.msra.mxu0 %v469
    %1198 = vmatprep.subr.mxu0 %v473
    %1199 = vmatpush1.msra.mxu0 %v472
    %1200 = vmatprep.subr.mxu0 %v476
    %1201 = vmatpush1.msra.mxu0 %v475
    %1202 = vmatprep.subr.mxu0 %v479
    %1203 = vmatpush1.msra.mxu0 %v478
    %1204 = vmatprep.subr.mxu0 0.0
    %1205 = vmatpush1.msra.mxu0 0.0
    %1206 = vmatprep.subr.mxu0 0.0
    %1207 = vmatpush1.msra.mxu0 0.0
    %1208 = vmatprep.subr.mxu0 0.0
    %1209 = vmatpush1.msra.mxu0 0.0
    %1210 = vmatprep.subr.mxu0 0.0
    %1211 = vmatpush1.msra.mxu0 0.0
    %1212 = vmatprep.subr.mxu0 0.0
    %1213 = vmatpush1.msra.mxu0 0.0
    %1214 = vmatprep.subr.mxu0 0.0
    %1215 = vmatpush1.msra.mxu0 0.0
    %1216 = vmatprep.subr.mxu0 0.0
    %1217 = vmatpush1.msra.mxu0 0.0
    %1218 = vmatprep.subr.mxu0 0.0
    %1219 = vmatpush1.msra.mxu0 0.0
    %1220 = vmatprep.subr.mxu0 0.0
    %1221 = vmatpush1.msra.mxu0 0.0
    %1222 = vmatprep.subr.mxu0 0.0
    %1223 = vmatpush1.msra.mxu0 0.0
    %1224 = vmatprep.subr.mxu0 0.0
    %1225 = vmatpush1.msra.mxu0 0.0
    %1226 = vmatprep.subr.mxu0 0.0
    %1227 = vmatpush1.msra.mxu0 0.0
    %1228 = vmatprep.subr.mxu0 0.0
    %1229 = vmatpush1.msra.mxu0 0.0
    %1230 = vmatprep.subr.mxu0 0.0
    %1231 = vmatpush1.msra.mxu0 0.0
    %1232 = vmatprep.subr.mxu0 0.0
    %1233 = vmatpush1.msra.mxu0 0.0
    %1234 = vmatprep.subr.mxu0 0.0
    %1235 = vmatpush1.msra.mxu0 0.0
    %1236 = vmatprep.mubr.f32.mxu0 0.0
    %1237 = vmatmul.mubr.f32.gmra.mrb[0].mxu0 %v1165
    %v1238 = vpop.f32.mrb[0].mxu0
    %v1239 = vadd.f32 %v489, %v1238
    %v1240 = vpop.f32.mrb[0].mxu0
    %v1241 = vadd.f32 %v493, %v1240
    %1242 = vdwg.mxu0
    %1243 = vmatprep.subr.mxu0 0.0
    %1244 = vmatpush1.msra.mxu0 %v435
    %1245 = vmatprep.subr.mxu0 0.0
    %1246 = vmatpush1.msra.mxu0 %v438
    %1247 = vmatprep.subr.mxu0 0.0
    %1248 = vmatpush1.msra.mxu0 %v441
    %1249 = vmatprep.subr.mxu0 0.0
    %1250 = vmatpush1.msra.mxu0 %v444
    %1251 = vmatprep.subr.mxu0 0.0
    %1252 = vmatpush1.msra.mxu0 %v447
    %1253 = vmatprep.subr.mxu0 0.0
    %1254 = vmatpush1.msra.mxu0 %v450
    %1255 = vmatprep.subr.mxu0 0.0
    %1256 = vmatpush1.msra.mxu0 %v453
    %1257 = vmatprep.subr.mxu0 0.0
    %1258 = vmatpush1.msra.mxu0 %v456
    %1259 = vmatprep.subr.mxu0 0.0
    %1260 = vmatpush1.msra.mxu0 %v459
    %1261 = vmatprep.subr.mxu0 0.0
    %1262 = vmatpush1.msra.mxu0 %v462
    %1263 = vmatprep.subr.mxu0 0.0
    %1264 = vmatpush1.msra.mxu0 %v465
    %1265 = vmatprep.subr.mxu0 0.0
    %1266 = vmatpush1.msra.mxu0 %v468
    %1267 = vmatprep.subr.mxu0 0.0
    %1268 = vmatpush1.msra.mxu0 %v471
    %1269 = vmatprep.subr.mxu0 0.0
    %1270 = vmatpush1.msra.mxu0 %v474
    %1271 = vmatprep.subr.mxu0 0.0
    %1272 = vmatpush1.msra.mxu0 %v477
    %1273 = vmatprep.subr.mxu0 0.0
    %1274 = vmatpush1.msra.mxu0 %v480
    %1275 = vmatprep.subr.mxu0 0.0
    %1276 = vmatpush1.msra.mxu0 0.0
    %1277 = vmatprep.subr.mxu0 0.0
    %1278 = vmatpush1.msra.mxu0 0.0
    %1279 = vmatprep.subr.mxu0 0.0
    %1280 = vmatpush1.msra.mxu0 0.0
    %1281 = vmatprep.subr.mxu0 0.0
    %1282 = vmatpush1.msra.mxu0 0.0
    %1283 = vmatprep.subr.mxu0 0.0
    %1284 = vmatpush1.msra.mxu0 0.0
    %1285 = vmatprep.subr.mxu0 0.0
    %1286 = vmatpush1.msra.mxu0 0.0
    %1287 = vmatprep.subr.mxu0 0.0
    %1288 = vmatpush1.msra.mxu0 0.0
    %1289 = vmatprep.subr.mxu0 0.0
    %1290 = vmatpush1.msra.mxu0 0.0
    %1291 = vmatprep.subr.mxu0 0.0
    %1292 = vmatpush1.msra.mxu0 0.0
    %1293 = vmatprep.subr.mxu0 0.0
    %1294 = vmatpush1.msra.mxu0 0.0
    %1295 = vmatprep.subr.mxu0 0.0
    %1296 = vmatpush1.msra.mxu0 0.0
    %1297 = vmatprep.subr.mxu0 0.0
    %1298 = vmatpush1.msra.mxu0 0.0
    %1299 = vmatprep.subr.mxu0 0.0
    %1300 = vmatpush1.msra.mxu0 0.0
    %1301 = vmatprep.subr.mxu0 0.0
    %1302 = vmatpush1.msra.mxu0 0.0
    %1303 = vmatprep.subr.mxu0 0.0
    %1304 = vmatpush1.msra.mxu0 0.0
    %1305 = vmatprep.subr.mxu0 0.0
    %1306 = vmatpush1.msra.mxu0 0.0
    %1307 = vmatprep.mubr.f32.mxu0 0.0
    %1308 = vmatmul.mubr.f32.gmra.mrb[0].mxu0 %v1165
    %v1309 = vpop.f32.mrb[0].mxu0
    %v1310 = vadd.f32 %v497, %v1309
    %v1311 = vpop.f32.mrb[0].mxu0
    %1312 = vdwg.mxu0
    %v1313 = vadd.f32 %v1169, %v1239
    %v1314 = vxor.u32 %v1313, 2147483648
    %v1315 = vmul.f32 %v1314, 1.442695
    %v1316 = vpow.pop %v1315
    %v1317 = vadd.f32 %v1316, 1.0
    %v1318 = vrcp.pop %v1317
    %v1319 = vmul.f32 1.0, %v1318
    %v1320 = vadd.f32 %v1170, %v1241
    %v1321 = vxor.u32 %v1320, 2147483648
    %v1322 = vmul.f32 %v1321, 1.442695
    %v1323 = vpow.pop %v1322
    %v1324 = vadd.f32 %v1323, 1.0
    %v1325 = vrcp.pop %v1324
    %v1326 = vmul.f32 1.0, %v1325
    %v1327 = vmul.f32 %v1319, %v1310
    %v1328 = vadd.f32 %v1171, %v1327
    %v1329 = vtanh.pop %v1328
    %v1330 = vsub.f32 1.0, %v1326
    %v1331 = vmul.f32 %v1330, %v1329
    %v1332 = vmul.f32 %v1326, %v1165
    %v1333 = vadd.f32 %v1331, %v1332
    %s1334 = scalar_lea.vmem %s8, 32
    %1335 = vst [vmem:[%s1334] sm:$0xff] %v1333
    %s1336 = scalar_lea.vmem [#allocation2], 120
    %v1337 = vld [vmem:[%s1336] sm:$0xff]
    %v1338 = vld [vmem:[%s1336 + $0x8] sm:$0xff]
    %v1339 = vld [vmem:[%s1336 + $0x10] sm:$0xff]
    %1340 = vmatprep.subr.mxu0 %v434
    %1341 = vmatpush1.msra.mxu0 %v433
    %1342 = vmatprep.subr.mxu0 %v437
    %1343 = vmatpush1.msra.mxu0 %v436
    %1344 = vmatprep.subr.mxu0 %v440
    %1345 = vmatpush1.msra.mxu0 %v439
    %1346 = vmatprep.subr.mxu0 %v443
    %1347 = vmatpush1.msra.mxu0 %v442
    %1348 = vmatprep.subr.mxu0 %v446
    %1349 = vmatpush1.msra.mxu0 %v445
    %1350 = vmatprep.subr.mxu0 %v449
    %1351 = vmatpush1.msra.mxu0 %v448
    %1352 = vmatprep.subr.mxu0 %v452
    %1353 = vmatpush1.msra.mxu0 %v451
    %1354 = vmatprep.subr.mxu0 %v455
    %1355 = vmatpush1.msra.mxu0 %v454
    %1356 = vmatprep.subr.mxu0 %v458
    %1357 = vmatpush1.msra.mxu0 %v457
    %1358 = vmatprep.subr.mxu0 %v461
    %1359 = vmatpush1.msra.mxu0 %v460
    %1360 = vmatprep.subr.mxu0 %v464
    %1361 = vmatpush1.msra.mxu0 %v463
    %1362 = vmatprep.subr.mxu0 %v467
    %1363 = vmatpush1.msra.mxu0 %v466
    %1364 = vmatprep.subr.mxu0 %v470
    %1365 = vmatpush1.msra.mxu0 %v469
    %1366 = vmatprep.subr.mxu0 %v473
    %1367 = vmatpush1.msra.mxu0 %v472
    %1368 = vmatprep.subr.mxu0 %v476
    %1369 = vmatpush1.msra.mxu0 %v475
    %1370 = vmatprep.subr.mxu0 %v479
    %1371 = vmatpush1.msra.mxu0 %v478
    %1372 = vmatprep.subr.mxu0 0.0
    %1373 = vmatpush1.msra.mxu0 0.0
    %1374 = vmatprep.subr.mxu0 0.0
    %1375 = vmatpush1.msra.mxu0 0.0
    %1376 = vmatprep.subr.mxu0 0.0
    %1377 = vmatpush1.msra.mxu0 0.0
    %1378 = vmatprep.subr.mxu0 0.0
    %1379 = vmatpush1.msra.mxu0 0.0
    %1380 = vmatprep.subr.mxu0 0.0
    %1381 = vmatpush1.msra.mxu0 0.0
    %1382 = vmatprep.subr.mxu0 0.0
    %1383 = vmatpush1.msra.mxu0 0.0
    %1384 = vmatprep.subr.mxu0 0.0
    %1385 = vmatpush1.msra.mxu0 0.0
    %1386 = vmatprep.subr.mxu0 0.0
    %1387 = vmatpush1.msra.mxu0 0.0
    %1388 = vmatprep.subr.mxu0 0.0
    %1389 = vmatpush1.msra.mxu0 0.0
    %1390 = vmatprep.subr.mxu0 0.0
    %1391 = vmatpush1.msra.mxu0 0.0
    %1392 = vmatprep.subr.mxu0 0.0
    %1393 = vmatpush1.msra.mxu0 0.0
    %1394 = vmatprep.subr.mxu0 0.0
    %1395 = vmatpush1.msra.mxu0 0.0
    %1396 = vmatprep.subr.mxu0 0.0
    %1397 = vmatpush1.msra.mxu0 0.0
    %1398 = vmatprep.subr.mxu0 0.0
    %1399 = vmatpush1.msra.mxu0 0.0
    %1400 = vmatprep.subr.mxu0 0.0
    %1401 = vmatpush1.msra.mxu0 0.0
    %1402 = vmatprep.subr.mxu0 0.0
    %1403 = vmatpush1.msra.mxu0 0.0
    %1404 = vmatprep.mubr.f32.mxu0 0.0
    %1405 = vmatmul.mubr.f32.gmra.mrb[0].mxu0 %v1333
    %v1406 = vpop.f32.mrb[0].mxu0
    %v1407 = vadd.f32 %v489, %v1406
    %v1408 = vpop.f32.mrb[0].mxu0
    %v1409 = vadd.f32 %v493, %v1408
    %1410 = vdwg.mxu0
    %1411 = vmatprep.subr.mxu0 0.0
    %1412 = vmatpush1.msra.mxu0 %v435
    %1413 = vmatprep.subr.mxu0 0.0
    %1414 = vmatpush1.msra.mxu0 %v438
    %1415 = vmatprep.subr.mxu0 0.0
    %1416 = vmatpush1.msra.mxu0 %v441
    %1417 = vmatprep.subr.mxu0 0.0
    %1418 = vmatpush1.msra.mxu0 %v444
    %1419 = vmatprep.subr.mxu0 0.0
    %1420 = vmatpush1.msra.mxu0 %v447
    %1421 = vmatprep.subr.mxu0 0.0
    %1422 = vmatpush1.msra.mxu0 %v450
    %1423 = vmatprep.subr.mxu0 0.0
    %1424 = vmatpush1.msra.mxu0 %v453
    %1425 = vmatprep.subr.mxu0 0.0
    %1426 = vmatpush1.msra.mxu0 %v456
    %1427 = vmatprep.subr.mxu0 0.0
    %1428 = vmatpush1.msra.mxu0 %v459
    %1429 = vmatprep.subr.mxu0 0.0
    %1430 = vmatpush1.msra.mxu0 %v462
    %1431 = vmatprep.subr.mxu0 0.0
    %1432 = vmatpush1.msra.mxu0 %v465
    %1433 = vmatprep.subr.mxu0 0.0
    %1434 = vmatpush1.msra.mxu0 %v468
    %1435 = vmatprep.subr.mxu0 0.0
    %1436 = vmatpush1.msra.mxu0 %v471
    %1437 = vmatprep.subr.mxu0 0.0
    %1438 = vmatpush1.msra.mxu0 %v474
    %1439 = vmatprep.subr.mxu0 0.0
    %1440 = vmatpush1.msra.mxu0 %v477
    %1441 = vmatprep.subr.mxu0 0.0
    %1442 = vmatpush1.msra.mxu0 %v480
    %1443 = vmatprep.subr.mxu0 0.0
    %1444 = vmatpush1.msra.mxu0 0.0
    %1445 = vmatprep.subr.mxu0 0.0
    %1446 = vmatpush1.msra.mxu0 0.0
    %1447 = vmatprep.subr.mxu0 0.0
    %1448 = vmatpush1.msra.mxu0 0.0
    %1449 = vmatprep.subr.mxu0 0.0
    %1450 = vmatpush1.msra.mxu0 0.0
    %1451 = vmatprep.subr.mxu0 0.0
    %1452 = vmatpush1.msra.mxu0 0.0
    %1453 = vmatprep.subr.mxu0 0.0
    %1454 = vmatpush1.msra.mxu0 0.0
    %1455 = vmatprep.subr.mxu0 0.0
    %1456 = vmatpush1.msra.mxu0 0.0
    %1457 = vmatprep.subr.mxu0 0.0
    %1458 = vmatpush1.msra.mxu0 0.0
    %1459 = vmatprep.subr.mxu0 0.0
    %1460 = vmatpush1.msra.mxu0 0.0
    %1461 = vmatprep.subr.mxu0 0.0
    %1462 = vmatpush1.msra.mxu0 0.0
    %1463 = vmatprep.subr.mxu0 0.0
    %1464 = vmatpush1.msra.mxu0 0.0
    %1465 = vmatprep.subr.mxu0 0.0
    %1466 = vmatpush1.msra.mxu0 0.0
    %1467 = vmatprep.subr.mxu0 0.0
    %1468 = vmatpush1.msra.mxu0 0.0
    %1469 = vmatprep.subr.mxu0 0.0
    %1470 = vmatpush1.msra.mxu0 0.0
    %1471 = vmatprep.subr.mxu0 0.0
    %1472 = vmatpush1.msra.mxu0 0.0
    %1473 = vmatprep.subr.mxu0 0.0
    %1474 = vmatpush1.msra.mxu0 0.0
    %1475 = vmatprep.mubr.f32.mxu0 0.0
    %1476 = vmatmul.mubr.f32.gmra.mrb[0].mxu0 %v1333
    %v1477 = vpop.f32.mrb[0].mxu0
    %v1478 = vadd.f32 %v497, %v1477
    %v1479 = vpop.f32.mrb[0].mxu0
    %1480 = vdwg.mxu0
    %v1481 = vadd.f32 %v1337, %v1407
    %v1482 = vxor.u32 %v1481, 2147483648
    %v1483 = vmul.f32 %v1482, 1.442695
    %v1484 = vpow.pop %v1483
    %v1485 = vadd.f32 %v1484, 1.0
    %v1486 = vrcp.pop %v1485
    %v1487 = vmul.f32 1.0, %v1486
    %v1488 = vadd.f32 %v1338, %v1409
    %v1489 = vxor.u32 %v1488, 2147483648
    %v1490 = vmul.f32 %v1489, 1.442695
    %v1491 = vpow.pop %v1490
    %v1492 = vadd.f32 %v1491, 1.0
    %v1493 = vrcp.pop %v1492
    %v1494 = vmul.f32 1.0, %v1493
    %v1495 = vmul.f32 %v1487, %v1478
    %v1496 = vadd.f32 %v1339, %v1495
    %v1497 = vtanh.pop %v1496
    %v1498 = vsub.f32 1.0, %v1494
    %v1499 = vmul.f32 %v1498, %v1497
    %v1500 = vmul.f32 %v1494, %v1333
    %v1501 = vadd.f32 %v1499, %v1500
    %s1502 = scalar_lea.vmem %s8, 40
    %1503 = vst [vmem:[%s1502] sm:$0xff] %v1501
    %s1504 = scalar_lea.vmem [#allocation2], 144
    %v1505 = vld [vmem:[%s1504] sm:$0xff]
    %v1506 = vld [vmem:[%s1504 + $0x8] sm:$0xff]
    %v1507 = vld [vmem:[%s1504 + $0x10] sm:$0xff]
    %1508 = vmatprep.subr.mxu0 %v434
    %1509 = vmatpush1.msra.mxu0 %v433
    %1510 = vmatprep.subr.mxu0 %v437
    %1511 = vmatpush1.msra.mxu0 %v436
    %1512 = vmatprep.subr.mxu0 %v440
    %1513 = vmatpush1.msra.mxu0 %v439
    %1514 = vmatprep.subr.mxu0 %v443
    %1515 = vmatpush1.msra.mxu0 %v442
    %1516 = vmatprep.subr.mxu0 %v446
    %1517 = vmatpush1.msra.mxu0 %v445
    %1518 = vmatprep.subr.mxu0 %v449
    %1519 = vmatpush1.msra.mxu0 %v448
    %1520 = vmatprep.subr.mxu0 %v452
    %1521 = vmatpush1.msra.mxu0 %v451
    %1522 = vmatprep.subr.mxu0 %v455
    %1523 = vmatpush1.msra.mxu0 %v454
    %1524 = vmatprep.subr.mxu0 %v458
    %1525 = vmatpush1.msra.mxu0 %v457
    %1526 = vmatprep.subr.mxu0 %v461
    %1527 = vmatpush1.msra.mxu0 %v460
    %1528 = vmatprep.subr.mxu0 %v464
    %1529 = vmatpush1.msra.mxu0 %v463
    %1530 = vmatprep.subr.mxu0 %v467
    %1531 = vmatpush1.msra.mxu0 %v466
    %1532 = vmatprep.subr.mxu0 %v470
    %1533 = vmatpush1.msra.mxu0 %v469
    %1534 = vmatprep.subr.mxu0 %v473
    %1535 = vmatpush1.msra.mxu0 %v472
    %1536 = vmatprep.subr.mxu0 %v476
    %1537 = vmatpush1.msra.mxu0 %v475
    %1538 = vmatprep.subr.mxu0 %v479
    %1539 = vmatpush1.msra.mxu0 %v478
    %1540 = vmatprep.subr.mxu0 0.0
    %1541 = vmatpush1.msra.mxu0 0.0
    %1542 = vmatprep.subr.mxu0 0.0
    %1543 = vmatpush1.msra.mxu0 0.0
    %1544 = vmatprep.subr.mxu0 0.0
    %1545 = vmatpush1.msra.mxu0 0.0
    %1546 = vmatprep.subr.mxu0 0.0
    %1547 = vmatpush1.msra.mxu0 0.0
    %1548 = vmatprep.subr.mxu0 0.0
    %1549 = vmatpush1.msra.mxu0 0.0
    %1550 = vmatprep.subr.mxu0 0.0
    %1551 = vmatpush1.msra.mxu0 0.0
    %1552 = vmatprep.subr.mxu0 0.0
    %1553 = vmatpush1.msra.mxu0 0.0
    %1554 = vmatprep.subr.mxu0 0.0
    %1555 = vmatpush1.msra.mxu0 0.0
    %1556 = vmatprep.subr.mxu0 0.0
    %1557 = vmatpush1.msra.mxu0 0.0
    %1558 = vmatprep.subr.mxu0 0.0
    %1559 = vmatpush1.msra.mxu0 0.0
    %1560 = vmatprep.subr.mxu0 0.0
    %1561 = vmatpush1.msra.mxu0 0.0
    %1562 = vmatprep.subr.mxu0 0.0
    %1563 = vmatpush1.msra.mxu0 0.0
    %1564 = vmatprep.subr.mxu0 0.0
    %1565 = vmatpush1.msra.mxu0 0.0
    %1566 = vmatprep.subr.mxu0 0.0
    %1567 = vmatpush1.msra.mxu0 0.0
    %1568 = vmatprep.subr.mxu0 0.0
    %1569 = vmatpush1.msra.mxu0 0.0
    %1570 = vmatprep.subr.mxu0 0.0
    %1571 = vmatpush1.msra.mxu0 0.0
    %1572 = vmatprep.mubr.f32.mxu0 0.0
    %1573 = vmatmul.mubr.f32.gmra.mrb[0].mxu0 %v1501
    %v1574 = vpop.f32.mrb[0].mxu0
    %v1575 = vadd.f32 %v489, %v1574
    %v1576 = vpop.f32.mrb[0].mxu0
    %v1577 = vadd.f32 %v493, %v1576
    %1578 = vdwg.mxu0
    %1579 = vmatprep.subr.mxu0 0.0
    %1580 = vmatpush1.msra.mxu0 %v435
    %1581 = vmatprep.subr.mxu0 0.0
    %1582 = vmatpush1.msra.mxu0 %v438
    %1583 = vmatprep.subr.mxu0 0.0
    %1584 = vmatpush1.msra.mxu0 %v441
    %1585 = vmatprep.subr.mxu0 0.0
    %1586 = vmatpush1.msra.mxu0 %v444
    %1587 = vmatprep.subr.mxu0 0.0
    %1588 = vmatpush1.msra.mxu0 %v447
    %1589 = vmatprep.subr.mxu0 0.0
    %1590 = vmatpush1.msra.mxu0 %v450
    %1591 = vmatprep.subr.mxu0 0.0
    %1592 = vmatpush1.msra.mxu0 %v453
    %1593 = vmatprep.subr.mxu0 0.0
    %1594 = vmatpush1.msra.mxu0 %v456
    %1595 = vmatprep.subr.mxu0 0.0
    %1596 = vmatpush1.msra.mxu0 %v459
    %1597 = vmatprep.subr.mxu0 0.0
    %1598 = vmatpush1.msra.mxu0 %v462
    %1599 = vmatprep.subr.mxu0 0.0
    %1600 = vmatpush1.msra.mxu0 %v465
    %1601 = vmatprep.subr.mxu0 0.0
    %1602 = vmatpush1.msra.mxu0 %v468
    %1603 = vmatprep.subr.mxu0 0.0
    %1604 = vmatpush1.msra.mxu0 %v471
    %1605 = vmatprep.subr.mxu0 0.0
    %1606 = vmatpush1.msra.mxu0 %v474
    %1607 = vmatprep.subr.mxu0 0.0
    %1608 = vmatpush1.msra.mxu0 %v477
    %1609 = vmatprep.subr.mxu0 0.0
    %1610 = vmatpush1.msra.mxu0 %v480
    %1611 = vmatprep.subr.mxu0 0.0
    %1612 = vmatpush1.msra.mxu0 0.0
    %1613 = vmatprep.subr.mxu0 0.0
    %1614 = vmatpush1.msra.mxu0 0.0
    %1615 = vmatprep.subr.mxu0 0.0
    %1616 = vmatpush1.msra.mxu0 0.0
    %1617 = vmatprep.subr.mxu0 0.0
    %1618 = vmatpush1.msra.mxu0 0.0
    %1619 = vmatprep.subr.mxu0 0.0
    %1620 = vmatpush1.msra.mxu0 0.0
    %1621 = vmatprep.subr.mxu0 0.0
    %1622 = vmatpush1.msra.mxu0 0.0
    %1623 = vmatprep.subr.mxu0 0.0
    %1624 = vmatpush1.msra.mxu0 0.0
    %1625 = vmatprep.subr.mxu0 0.0
    %1626 = vmatpush1.msra.mxu0 0.0
    %1627 = vmatprep.subr.mxu0 0.0
    %1628 = vmatpush1.msra.mxu0 0.0
    %1629 = vmatprep.subr.mxu0 0.0
    %1630 = vmatpush1.msra.mxu0 0.0
    %1631 = vmatprep.subr.mxu0 0.0
    %1632 = vmatpush1.msra.mxu0 0.0
    %1633 = vmatprep.subr.mxu0 0.0
    %1634 = vmatpush1.msra.mxu0 0.0
    %1635 = vmatprep.subr.mxu0 0.0
    %1636 = vmatpush1.msra.mxu0 0.0
    %1637 = vmatprep.subr.mxu0 0.0
    %1638 = vmatpush1.msra.mxu0 0.0
    %1639 = vmatprep.subr.mxu0 0.0
    %1640 = vmatpush1.msra.mxu0 0.0
    %1641 = vmatprep.subr.mxu0 0.0
    %1642 = vmatpush1.msra.mxu0 0.0
    %1643 = vmatprep.mubr.f32.mxu0 0.0
    %1644 = vmatmul.mubr.f32.gmra.mrb[0].mxu0 %v1501
    %v1645 = vpop.f32.mrb[0].mxu0
    %v1646 = vadd.f32 %v497, %v1645
    %v1647 = vpop.f32.mrb[0].mxu0
    %1648 = vdwg.mxu0
    %v1649 = vadd.f32 %v1505, %v1575
    %v1650 = vxor.u32 %v1649, 2147483648
    %v1651 = vmul.f32 %v1650, 1.442695
    %v1652 = vpow.pop %v1651
    %v1653 = vadd.f32 %v1652, 1.0
    %v1654 = vrcp.pop %v1653
    %v1655 = vmul.f32 1.0, %v1654
    %v1656 = vadd.f32 %v1506, %v1577
    %v1657 = vxor.u32 %v1656, 2147483648
    %v1658 = vmul.f32 %v1657, 1.442695
    %v1659 = vpow.pop %v1658
    %v1660 = vadd.f32 %v1659, 1.0
    %v1661 = vrcp.pop %v1660
    %v1662 = vmul.f32 1.0, %v1661
    %v1663 = vmul.f32 %v1655, %v1646
    %v1664 = vadd.f32 %v1507, %v1663
    %v1665 = vtanh.pop %v1664
    %v1666 = vsub.f32 1.0, %v1662
    %v1667 = vmul.f32 %v1666, %v1665
    %v1668 = vmul.f32 %v1662, %v1501
    %v1669 = vadd.f32 %v1667, %v1668
    %s1670 = scalar_lea.vmem %s8, 48
    %1671 = vst [vmem:[%s1670] sm:$0xff] %v1669
    %s1672 = scalar_lea.vmem [#allocation2], 168
    %v1673 = vld [vmem:[%s1672] sm:$0xff]
    %v1674 = vld [vmem:[%s1672 + $0x8] sm:$0xff]
    %v1675 = vld [vmem:[%s1672 + $0x10] sm:$0xff]
    %1676 = vmatprep.subr.mxu0 %v434
    %1677 = vmatpush1.msra.mxu0 %v433
    %1678 = vmatprep.subr.mxu0 %v437
    %1679 = vmatpush1.msra.mxu0 %v436
    %1680 = vmatprep.subr.mxu0 %v440
    %1681 = vmatpush1.msra.mxu0 %v439
    %1682 = vmatprep.subr.mxu0 %v443
    %1683 = vmatpush1.msra.mxu0 %v442
    %1684 = vmatprep.subr.mxu0 %v446
    %1685 = vmatpush1.msra.mxu0 %v445
    %1686 = vmatprep.subr.mxu0 %v449
    %1687 = vmatpush1.msra.mxu0 %v448
    %1688 = vmatprep.subr.mxu0 %v452
    %1689 = vmatpush1.msra.mxu0 %v451
    %1690 = vmatprep.subr.mxu0 %v455
    %1691 = vmatpush1.msra.mxu0 %v454
    %1692 = vmatprep.subr.mxu0 %v458
    %1693 = vmatpush1.msra.mxu0 %v457
    %1694 = vmatprep.subr.mxu0 %v461
    %1695 = vmatpush1.msra.mxu0 %v460
    %1696 = vmatprep.subr.mxu0 %v464
    %1697 = vmatpush1.msra.mxu0 %v463
    %1698 = vmatprep.subr.mxu0 %v467
    %1699 = vmatpush1.msra.mxu0 %v466
    %1700 = vmatprep.subr.mxu0 %v470
    %1701 = vmatpush1.msra.mxu0 %v469
    %1702 = vmatprep.subr.mxu0 %v473
    %1703 = vmatpush1.msra.mxu0 %v472
    %1704 = vmatprep.subr.mxu0 %v476
    %1705 = vmatpush1.msra.mxu0 %v475
    %1706 = vmatprep.subr.mxu0 %v479
    %1707 = vmatpush1.msra.mxu0 %v478
    %1708 = vmatprep.subr.mxu0 0.0
    %1709 = vmatpush1.msra.mxu0 0.0
    %1710 = vmatprep.subr.mxu0 0.0
    %1711 = vmatpush1.msra.mxu0 0.0
    %1712 = vmatprep.subr.mxu0 0.0
    %1713 = vmatpush1.msra.mxu0 0.0
    %1714 = vmatprep.subr.mxu0 0.0
    %1715 = vmatpush1.msra.mxu0 0.0
    %1716 = vmatprep.subr.mxu0 0.0
    %1717 = vmatpush1.msra.mxu0 0.0
    %1718 = vmatprep.subr.mxu0 0.0
    %1719 = vmatpush1.msra.mxu0 0.0
    %1720 = vmatprep.subr.mxu0 0.0
    %1721 = vmatpush1.msra.mxu0 0.0
    %1722 = vmatprep.subr.mxu0 0.0
    %1723 = vmatpush1.msra.mxu0 0.0
    %1724 = vmatprep.subr.mxu0 0.0
    %1725 = vmatpush1.msra.mxu0 0.0
    %1726 = vmatprep.subr.mxu0 0.0
    %1727 = vmatpush1.msra.mxu0 0.0
    %1728 = vmatprep.subr.mxu0 0.0
    %1729 = vmatpush1.msra.mxu0 0.0
    %1730 = vmatprep.subr.mxu0 0.0
    %1731 = vmatpush1.msra.mxu0 0.0
    %1732 = vmatprep.subr.mxu0 0.0
    %1733 = vmatpush1.msra.mxu0 0.0
    %1734 = vmatprep.subr.mxu0 0.0
    %1735 = vmatpush1.msra.mxu0 0.0
    %1736 = vmatprep.subr.mxu0 0.0
    %1737 = vmatpush1.msra.mxu0 0.0
    %1738 = vmatprep.subr.mxu0 0.0
    %1739 = vmatpush1.msra.mxu0 0.0
    %1740 = vmatprep.mubr.f32.mxu0 0.0
    %1741 = vmatmul.mubr.f32.gmra.mrb[0].mxu0 %v1669
    %v1742 = vpop.f32.mrb[0].mxu0
    %v1743 = vadd.f32 %v489, %v1742
    %v1744 = vpop.f32.mrb[0].mxu0
    %v1745 = vadd.f32 %v493, %v1744
    %1746 = vdwg.mxu0
    %1747 = vmatprep.subr.mxu0 0.0
    %1748 = vmatpush1.msra.mxu0 %v435
    %1749 = vmatprep.subr.mxu0 0.0
    %1750 = vmatpush1.msra.mxu0 %v438
    %1751 = vmatprep.subr.mxu0 0.0
    %1752 = vmatpush1.msra.mxu0 %v441
    %1753 = vmatprep.subr.mxu0 0.0
    %1754 = vmatpush1.msra.mxu0 %v444
    %1755 = vmatprep.subr.mxu0 0.0
    %1756 = vmatpush1.msra.mxu0 %v447
    %1757 = vmatprep.subr.mxu0 0.0
    %1758 = vmatpush1.msra.mxu0 %v450
    %1759 = vmatprep.subr.mxu0 0.0
    %1760 = vmatpush1.msra.mxu0 %v453
    %1761 = vmatprep.subr.mxu0 0.0
    %1762 = vmatpush1.msra.mxu0 %v456
    %1763 = vmatprep.subr.mxu0 0.0
    %1764 = vmatpush1.msra.mxu0 %v459
    %1765 = vmatprep.subr.mxu0 0.0
    %1766 = vmatpush1.msra.mxu0 %v462
    %1767 = vmatprep.subr.mxu0 0.0
    %1768 = vmatpush1.msra.mxu0 %v465
    %1769 = vmatprep.subr.mxu0 0.0
    %1770 = vmatpush1.msra.mxu0 %v468
    %1771 = vmatprep.subr.mxu0 0.0
    %1772 = vmatpush1.msra.mxu0 %v471
    %1773 = vmatprep.subr.mxu0 0.0
    %1774 = vmatpush1.msra.mxu0 %v474
    %1775 = vmatprep.subr.mxu0 0.0
    %1776 = vmatpush1.msra.mxu0 %v477
    %1777 = vmatprep.subr.mxu0 0.0
    %1778 = vmatpush1.msra.mxu0 %v480
    %1779 = vmatprep.subr.mxu0 0.0
    %1780 = vmatpush1.msra.mxu0 0.0
    %1781 = vmatprep.subr.mxu0 0.0
    %1782 = vmatpush1.msra.mxu0 0.0
    %1783 = vmatprep.subr.mxu0 0.0
    %1784 = vmatpush1.msra.mxu0 0.0
    %1785 = vmatprep.subr.mxu0 0.0
    %1786 = vmatpush1.msra.mxu0 0.0
    %1787 = vmatprep.subr.mxu0 0.0
    %1788 = vmatpush1.msra.mxu0 0.0
    %1789 = vmatprep.subr.mxu0 0.0
    %1790 = vmatpush1.msra.mxu0 0.0
    %1791 = vmatprep.subr.mxu0 0.0
    %1792 = vmatpush1.msra.mxu0 0.0
    %1793 = vmatprep.subr.mxu0 0.0
    %1794 = vmatpush1.msra.mxu0 0.0
    %1795 = vmatprep.subr.mxu0 0.0
    %1796 = vmatpush1.msra.mxu0 0.0
    %1797 = vmatprep.subr.mxu0 0.0
    %1798 = vmatpush1.msra.mxu0 0.0
    %1799 = vmatprep.subr.mxu0 0.0
    %1800 = vmatpush1.msra.mxu0 0.0
    %1801 = vmatprep.subr.mxu0 0.0
    %1802 = vmatpush1.msra.mxu0 0.0
    %1803 = vmatprep.subr.mxu0 0.0
    %1804 = vmatpush1.msra.mxu0 0.0
    %1805 = vmatprep.subr.mxu0 0.0
    %1806 = vmatpush1.msra.mxu0 0.0
    %1807 = vmatprep.subr.mxu0 0.0
    %1808 = vmatpush1.msra.mxu0 0.0
    %1809 = vmatprep.subr.mxu0 0.0
    %1810 = vmatpush1.msra.mxu0 0.0
    %1811 = vmatprep.mubr.f32.mxu0 0.0
    %1812 = vmatmul.mubr.f32.gmra.mrb[0].mxu0 %v1669
    %v1813 = vpop.f32.mrb[0].mxu0
    %v1814 = vadd.f32 %v497, %v1813
    %v1815 = vpop.f32.mrb[0].mxu0
    %1816 = vdwg.mxu0
    %v1817 = vadd.f32 %v1673, %v1743
    %v1818 = vxor.u32 %v1817, 2147483648
    %v1819 = vmul.f32 %v1818, 1.442695
    %v1820 = vpow.pop %v1819
    %v1821 = vadd.f32 %v1820, 1.0
    %v1822 = vrcp.pop %v1821
    %v1823 = vmul.f32 1.0, %v1822
    %v1824 = vadd.f32 %v1674, %v1745
    %v1825 = vxor.u32 %v1824, 2147483648
    %v1826 = vmul.f32 %v1825, 1.442695
    %v1827 = vpow.pop %v1826
    %v1828 = vadd.f32 %v1827, 1.0
    %v1829 = vrcp.pop %v1828
    %v1830 = vmul.f32 1.0, %v1829
    %v1831 = vmul.f32 %v1823, %v1814
    %v1832 = vadd.f32 %v1675, %v1831
    %v1833 = vtanh.pop %v1832
    %v1834 = vsub.f32 1.0, %v1830
    %v1835 = vmul.f32 %v1834, %v1833
    %v1836 = vmul.f32 %v1830, %v1669
    %v1837 = vadd.f32 %v1835, %v1836
    %s1838 = scalar_lea.vmem %s8, 56
    %1839 = vst [vmem:[%s1838] sm:$0xff] %v1837
    %1840 = vst [vmem:[%s9] sm:$0xff] %v1837
    // Predicated region
    $region38: #{rnn_decoder_forward.2} parent=1 // pred_check
      _
    $region39: #{rnn_decoder_forward.2} parent=1 // pred_check_branch
      %1842 = sbr.rel (0) target = $region41
    $region40: #{rnn_decoder_forward.2} parent=1 // pred_region
      _
    $region41: #{rnn_decoder_forward.2} parent=1 // pred_fallthru
      _
    // Predicated region
    $region42: #{rnn_decoder_forward.2} parent=1 // pred_check
      _
    $region43: #{rnn_decoder_forward.2} parent=1 // pred_check_branch
      %1844 = sbr.rel (0) target = $region45
    $region44: #{rnn_decoder_forward.2} parent=1 // pred_region
      _
    $region45: #{rnn_decoder_forward.2} parent=1 // pred_fallthru
      _
    // Predicated region
    $region46: #{rnn_decoder_forward.2} parent=1 // pred_check
      _
    $region47: #{rnn_decoder_forward.2} parent=1 // pred_check_branch
      %1846 = sbr.rel (0) target = $region49
    $region48: #{rnn_decoder_forward.2} parent=1 // pred_region
      _
    $region49: #{rnn_decoder_forward.2} parent=1 // pred_fallthru
      _
    // Predicated region
    $region50: #{rnn_decoder_forward.2} parent=1 // pred_check
      _
    $region51: #{rnn_decoder_forward.2} parent=1 // pred_check_branch
      %1848 = sbr.rel (0) target = $region53
    $region52: #{rnn_decoder_forward.2} parent=1 // pred_region
      _
    $region53: #{rnn_decoder_forward.2} parent=1 // pred_fallthru
      _
    %1849 = vsyncpa [#allocation4], 1

</llo_original>
